<compile_context>
chip_gen: v6e
topology: v6e:2x2x1
jax: 0.10.0
libtpu: 0.0.40
codegen_flags: <defaults>
</compile_context>

<pallas_src>
import functools
import math

import jax
import jax.numpy as jnp
from jax.experimental import pallas as pl
from jax.experimental.pallas import tpu as pltpu


# SMEM scratch scalar slots (persist across the reduction axis of one half)
_E_SUM, _PITCH_SUM, _DUR_SUM, _FRAMES, _PHONES = 0, 1, 2, 3, 4


def _fs2_loss_kernel(
    melf_t_ref, melf_p_ref, postf_p_ref,   # (B, tile_r, 128) lane-dense mel tiles
    e_t_ref, e_p_ref,                      # (B, tile_t)      frame-level energy tiles
    pitch_t_ref, pitch_p_ref,              # (B, T_src)       resident (fetched once)
    dur_t_ref, logd_p_ref,                 # (B, T_src)       resident
    src_len_ref, mel_len_ref,              # (B, 1) int32     resident
    out_ref,                               # (1, 8, 128) f32  per-half partial sums
    acc_mel_ref, acc_post_ref,             # (tile_r, 128) f32 VMEM scratch
    sc_ref,                                # (8,) f32 SMEM scratch scalars
    *, n_mel,
):
    p = pl.program_id(0)                   # TensorCore half ("parallel")
    i = pl.program_id(1)                   # mel-time tile within the half
    n_i = pl.num_programs(1)

    b, tile_r, _ = melf_t_ref.shape
    tile_t = e_t_ref.shape[1]
    t_src = pitch_t_ref.shape[1]

    mel_len = mel_len_ref[...]             # (B, 1) int32
    overall = p * n_i + i                  # absolute mel-time tile index

    # ---- first step of this half: zero accumulators -------------------------
    @pl.when(i == 0)
    def _init():
        acc_mel_ref[...] = jnp.zeros_like(acc_mel_ref)
        acc_post_ref[...] = jnp.zeros_like(acc_post_ref)
        sc_ref[_E_SUM] = jnp.float32(0.0)
        sc_ref[_PITCH_SUM] = jnp.float32(0.0)
        sc_ref[_DUR_SUM] = jnp.float32(0.0)
        sc_ref[_FRAMES] = jnp.float32(0.0)
        sc_ref[_PHONES] = jnp.float32(0.0)

    # ---- phoneme-level terms + counts: computed once, on half 0 only --------
    @pl.when(jnp.logical_and(i == 0, p == 0))
    def _phoneme_terms():
        src_len = src_len_ref[...]         # (B, 1) int32
        src_m = jax.lax.broadcasted_iota(jnp.int32, (b, t_src), 1) < src_len
        pd = (pitch_p_ref[...].astype(jnp.float32)
              - pitch_t_ref[...].astype(jnp.float32))
        dd = (logd_p_ref[...].astype(jnp.float32)
              - jnp.log(dur_t_ref[...].astype(jnp.float32) + 1.0))
        sc_ref[_PITCH_SUM] = jnp.sum(jnp.where(src_m, pd * pd, 0.0))
        sc_ref[_DUR_SUM] = jnp.sum(jnp.where(src_m, dd * dd, 0.0))
        sc_ref[_FRAMES] = jnp.sum(mel_len.astype(jnp.float32))
        sc_ref[_PHONES] = jnp.sum(src_len.astype(jnp.float32))

    # ---- frame-level energy MSE, streamed with the mel tiles ----------------
    t0 = overall * tile_t
    frame_pos = t0 + jax.lax.broadcasted_iota(jnp.int32, (b, tile_t), 1)
    fm = frame_pos < mel_len
    ed = e_p_ref[...].astype(jnp.float32) - e_t_ref[...].astype(jnp.float32)
    sc_ref[_E_SUM] = sc_ref[_E_SUM] + jnp.sum(jnp.where(fm, ed * ed, 0.0))

    # ---- masked L1 partials for mel / postnet (lane-dense, VALU-only accum) -
    r0 = overall * tile_r
    row = r0 + jax.lax.broadcasted_iota(jnp.int32, (b, tile_r, 128), 1)
    lane = jax.lax.broadcasted_iota(jnp.int32, (b, tile_r, 128), 2)
    flat_pos = row * 128 + lane
    limit = jnp.expand_dims(mel_len, -1) * n_mel          # (B, 1, 1)
    m3 = flat_pos < limit                                  # excludes pad + OOB tiles

    mel_t = melf_t_ref[...].astype(jnp.float32)            # upcast in-kernel
    d_mel = jnp.where(m3, jnp.abs(melf_p_ref[...].astype(jnp.float32) - mel_t), 0.0)
    d_post = jnp.where(m3, jnp.abs(postf_p_ref[...].astype(jnp.float32) - mel_t), 0.0)

    # reduce only over the leading batch axis -> pure vector adds, no XLU
    acc_mel_ref[...] += jnp.sum(d_mel, axis=0)
    acc_post_ref[...] += jnp.sum(d_post, axis=0)

    # ---- last step of this half: single cross-lane reduce + pack partials ---
    @pl.when(i == n_i - 1)
    def _finalize():
        vals = (jnp.sum(acc_mel_ref[...]),     # 0: sum |mel_p - mel_t|
                jnp.sum(acc_post_ref[...]),    # 1: sum |post_p - mel_t|
                sc_ref[_E_SUM],                # 2: sum (e_p - e_t)^2
                sc_ref[_PITCH_SUM],            # 3: sum (pitch_p - pitch_t)^2
                sc_ref[_DUR_SUM],              # 4: sum (logd_p - log(d+1))^2
                sc_ref[_FRAMES],               # 5: #selected frames
                sc_ref[_PHONES])               # 6: #selected phonemes
        sub = jax.lax.broadcasted_iota(jnp.int32, (1, 8, 128), 1)
        res = jnp.zeros((1, 8, 128), jnp.float32)
        for k, v in enumerate(vals):
            res = jnp.where(sub == k, v, res)
        out_ref[...] = res


def _vmem_capacity_bytes():
    try:
        info = pltpu.get_tpu_info()
        cap = getattr(info, "vmem_capacity_bytes", None)
        if cap:
            return int(cap)
    except Exception:
        pass
    return 64 * 1024 * 1024  # conservative fallback (v7x-sized)


def fastspeech2_loss(data, predictions, *, tile_t=None):
    mel_pred = predictions["output"]
    post_pred = predictions["postnet_output"]
    pitch_pred = predictions["p_predictions"]
    energy_pred = predictions["e_predictions"]
    logd_pred = predictions["log_d_predictions"]

    b, t_mel, n_mel = mel_pred.shape
    t_src = pitch_pred.shape[1]

    # slice all mel-length tensors consistently to the prediction length
    mel_tgt = data["mel"][:, :t_mel, :]
    energy_tgt = data["energy"][:, :t_mel]
    pitch_tgt = data["pitch"][:, :t_src]
    dur_tgt = data["durations"][:, :t_src]

    src_lens = jnp.minimum(predictions["src_lens"].astype(jnp.int32), t_src).reshape(b, 1)
    mel_lens = jnp.minimum(predictions["mel_lens"].astype(jnp.int32), t_mel).reshape(b, 1)

    itm = lambda x: jnp.dtype(x.dtype).itemsize
    vmem_cap = _vmem_capacity_bytes()

    # frame-granularity quantum: tile_t % 128 == 0 (lane-dense energy blocks)
    # and tile_r = tile_t*n_mel/128 a multiple of 16 (bf16-friendly sublanes).
    quantum = 128 * (16 // math.gcd(n_mel, 16))
    stream_bytes_per_frame = b * (n_mel * (itm(mel_tgt) + itm(mel_pred) + itm(post_pred))
                                  + itm(energy_tgt) + itm(energy_pred))
    temp_bytes_per_frame = 5 * b * n_mel * 4          # f32 temporaries / accumulators

    if tile_t is None:
        budget = int(vmem_cap * 0.55)                 # ~35 MiB on v7x, ~70 MiB on v5e/v6e
        tile_t = budget // max(1, 2 * stream_bytes_per_frame + temp_bytes_per_frame)
        tile_t = min(tile_t, 1024)
    tile_t = max(quantum, (tile_t // quantum) * quantum)

    if tile_t >= t_mel:
        tile_t = t_mel                                # single tile spans the full axis
        n_tiles = 1
    else:
        n_tiles = -(-t_mel // tile_t)

    # ---- lane-dense flat view of the mel tensors (free row-major reshape) ---
    flat = t_mel * n_mel
    pad_f = (-flat) % 128

    def _lane_dense(x):
        x = x.reshape(b, flat)
        if pad_f:
            # TODO(synk): this pad copies the tensor; upstream bucketing so that
            # T_mel*n_mel % 128 == 0 avoids it.
            x = jnp.pad(x, ((0, 0), (0, pad_f)))
        return x.reshape(b, (flat + pad_f) // 128, 128)

    melf_tgt = _lane_dense(mel_tgt)
    melf_pred = _lane_dense(mel_pred)
    postf_pred = _lane_dense(post_pred)
    r_total = melf_tgt.shape[1]
    tile_r = r_total if n_tiles == 1 else (tile_t * n_mel) // 128

    # ---- grid: (TensorCore halves, mel-time tiles) --------------------------
    n_halves = 2 if n_tiles >= 2 else 1               # dual-TC split (2x on v7x)
    tiles_per_half = -(-n_tiles // n_halves)
    grid = (n_halves, tiles_per_half)
    last_tile = n_tiles - 1

    def _mel_idx(p, i):
        return (0, jnp.minimum(p * tiles_per_half + i, last_tile), 0)

    def _frame_idx(p, i):
        return (0, jnp.minimum(p * tiles_per_half + i, last_tile))

    melf_spec = pl.BlockSpec((b, tile_r, 128), _mel_idx)
    e_spec = pl.BlockSpec((b, tile_t), _frame_idx)
    src_spec = pl.BlockSpec((b, t_src), lambda p, i: (0, 0))
    len_spec = pl.BlockSpec((b, 1), lambda p, i: (0, 0))

    inputs = (melf_tgt, melf_pred, postf_pred,
              energy_tgt, energy_pred,
              pitch_tgt, pitch_pred,
              dur_tgt, logd_pred,
              src_lens, mel_lens)

    # ---- VMEM limit from the actual footprint (+ headroom) ------------------
    blk_stream = 2 * (b * tile_r * 128 * (itm(mel_tgt) + itm(mel_pred) + itm(post_pred))
                      + b * tile_t * (itm(energy_tgt) + itm(energy_pred)))
    blk_resident = 2 * (b * t_src * (itm(pitch_tgt) + itm(pitch_pred)
                                     + itm(dur_tgt) + itm(logd_pred)) + 2 * b * 4)
    blk_scratch = 2 * tile_r * 128 * 4 + n_halves * 8 * 128 * 4
    blk_temp = 5 * b * tile_r * 128 * 4               # f32 intermediates
    vmem_limit = blk_stream + blk_resident + blk_scratch + blk_temp + (4 << 20)
    vmem_limit = max(16 << 20, min(int(vmem_limit), int(vmem_cap * 0.9)))

    bytes_accessed = sum(int(x.size) * jnp.dtype(x.dtype).itemsize for x in inputs)
    cost = pl.CostEstimate(
        flops=12 * b * t_mel * n_mel + 4 * b * t_mel + 10 * b * t_src,
        transcendentals=b * t_src,
        bytes_accessed=bytes_accessed + n_halves * 8 * 128 * 4,
    )

    partials = pl.pallas_call(
        functools.partial(_fs2_loss_kernel, n_mel=n_mel),
        out_shape=jax.ShapeDtypeStruct((n_halves, 8, 128), jnp.float32),
        grid_spec=pltpu.PrefetchScalarGridSpec(
            num_scalar_prefetch=0,
            grid=grid,
            in_specs=[melf_spec, melf_spec, melf_spec,
                      e_spec, e_spec,
                      src_spec, src_spec,
                      src_spec, src_spec,
                      len_spec, len_spec],
            out_specs=pl.BlockSpec((1, 8, 128), lambda p, i: (p, 0, 0)),
            scratch_shapes=[pltpu.VMEM((tile_r, 128), jnp.float32),
                            pltpu.VMEM((tile_r, 128), jnp.float32),
                            pltpu.SMEM((8,), jnp.float32)],
        ),
        compiler_params=pltpu.CompilerParams(
            dimension_semantics=("parallel", "arbitrary"),
            vmem_limit_bytes=vmem_limit,
        ),
        cost_estimate=cost,
    )(*inputs)

    sums = jnp.sum(partials[:, :7, 0], axis=0)        # combine the two halves
    n_frames = sums[5]
    n_phones = sums[6]
    # divide by the count first, then by n_mel (avoids f32 count*n_mel rounding)
    mel_loss = sums[0] / n_frames / n_mel
    postnet_mel_loss = sums[1] / n_frames / n_mel
    energy_loss = sums[2] / n_frames
    pitch_loss = sums[3] / n_phones
    duration_loss = sums[4] / n_phones
    total_loss = (mel_loss + postnet_mel_loss + duration_loss
                  + pitch_loss + energy_loss)
    return {
        "loss": total_loss,
        "mel_loss": mel_loss,
        "postnet_mel_loss": postnet_mel_loss,
        "pitch_loss": pitch_loss,
        "energy_loss": energy_loss,
        "duration_loss": duration_loss,
    }


def _reference_loss(data, predictions):
    """Pure-JAX reference (masked_select == masked mean), all f32."""
    mel_pred = predictions["output"].astype(jnp.float32)
    post_pred = predictions["postnet_output"].astype(jnp.float32)
    pitch_pred = predictions["p_predictions"].astype(jnp.float32)
    energy_pred = predictions["e_predictions"].astype(jnp.float32)
    logd_pred = predictions["log_d_predictions"].astype(jnp.float32)

    b, t_mel, n_mel = mel_pred.shape
    t_src = pitch_pred.shape[1]

    mel_t = data["mel"][:, :t_mel, :].astype(jnp.float32)
    energy_t = data["energy"][:, :t_mel].astype(jnp.float32)
    pitch_t = data["pitch"][:, :t_src].astype(jnp.float32)
    dur_t = data["durations"][:, :t_src].astype(jnp.float32)

    src_valid = (jnp.arange(t_src)[None, :]
                 < predictions["src_lens"][:, None]).astype(jnp.float32)
    mel_valid = (jnp.arange(t_mel)[None, :]
                 < predictions["mel_lens"][:, None]).astype(jnp.float32)

    m3 = mel_valid[:, :, None]
    denom_mel = jnp.sum(mel_valid) * n_mel
    mel_loss = jnp.sum(jnp.abs(mel_pred - mel_t) * m3) / denom_mel
    post_loss = jnp.sum(jnp.abs(post_pred - mel_t) * m3) / denom_mel
    pitch_loss = jnp.sum((pitch_pred - pitch_t) ** 2 * src_valid) / jnp.sum(src_valid)
    energy_loss = jnp.sum((energy_pred - energy_t) ** 2 * mel_valid) / jnp.sum(mel_valid)
    logd_t = jnp.log(dur_t + 1.0)
    dur_loss = jnp.sum((logd_pred - logd_t) ** 2 * src_valid) / jnp.sum(src_valid)
    return {
        "loss": mel_loss + post_loss + dur_loss + pitch_loss + energy_loss,
        "mel_loss": mel_loss,
        "postnet_mel_loss": post_loss,
        "pitch_loss": pitch_loss,
        "energy_loss": energy_loss,
        "duration_loss": dur_loss,
    }


if __name__ == "__main__":
    key = jax.random.PRNGKey(0)
    B, T_SRC, T_MEL, N_MEL = 2, 8, 384, 32

    ks = jax.random.split(key, 9)
    # targets (as produced by the data pipeline): f32 / int32
    mel = jax.random.normal(ks[0], (B, T_MEL, N_MEL), jnp.float32)
    pitch = jax.random.normal(ks[1], (B, T_SRC), jnp.float32)
    energy = jax.random.normal(ks[2], (B, T_MEL), jnp.float32)
    durations = jax.random.randint(ks[3], (B, T_SRC), 0, 5).astype(jnp.int32)

    # model outputs: native bf16 (upcast happens inside the kernel)
    output = jax.random.normal(ks[4], (B, T_MEL, N_MEL), jnp.float32).astype(jnp.bfloat16)
    postnet_output = jax.random.normal(ks[5], (B, T_MEL, N_MEL), jnp.float32).astype(jnp.bfloat16)
    p_pred = jax.random.normal(ks[6], (B, T_SRC), jnp.float32).astype(jnp.bfloat16)
    e_pred = jax.random.normal(ks[7], (B, T_MEL), jnp.float32).astype(jnp.bfloat16)
    log_d_pred = jax.random.normal(ks[8], (B, T_SRC), jnp.float32).astype(jnp.bfloat16)

    src_lens = jnp.array([8, 5], jnp.int32)
    mel_lens = jnp.array([384, 290], jnp.int32)

    data = {"mel": mel, "pitch": pitch, "energy": energy, "durations": durations}
    predictions = {
        "output": output,
        "postnet_output": postnet_output,
        "p_predictions": p_pred,
        "e_predictions": e_pred,
        "log_d_predictions": log_d_pred,
        "src_lens": src_lens,
        "mel_lens": mel_lens,
    }

    ref = _reference_loss(data, predictions)
    keys = ("loss", "mel_loss", "postnet_mel_loss", "pitch_loss",
            "energy_loss", "duration_loss")

    # multi-tile path: exercises the dual-half grid, streamed accumulation and
    # the clamped, fully-masked tail tile (3 tiles of 128 frames -> grid (2, 2))
    losses = fastspeech2_loss(data, predictions, tile_t=128)
    losses = jax.tree_util.tree_map(jax.block_until_ready, losses)
    for k in keys:
        assert jnp.allclose(losses[k], ref[k], rtol=2e-4, atol=1e-5), (
            k, losses[k], ref[k])

    # auto-tiled path (single resident tile at these small shapes)
    losses2 = fastspeech2_loss(data, predictions)
    losses2 = jax.tree_util.tree_map(jax.block_until_ready, losses2)
    for k in keys:
        assert jnp.allclose(losses2[k], ref[k], rtol=2e-4, atol=1e-5), (
            k, losses2[k], ref[k])

    print("KERNEL_OK")
</pallas_src>

<mosaic_0001>
module attributes {stable_mosaic.version = 11 : i64} {
  func.func @_fs2_loss_kernel(%arg0: i32, %arg1: i32, %arg2: memref<2x32x128xf32, #tpu.memory_space<vmem>>, %arg3: memref<2x32x128xbf16, #tpu.memory_space<vmem>>, %arg4: memref<2x32x128xbf16, #tpu.memory_space<vmem>>, %arg5: memref<2x128xf32, #tpu.memory_space<vmem>>, %arg6: memref<2x128xbf16, #tpu.memory_space<vmem>>, %arg7: memref<2x8xf32, #tpu.memory_space<vmem>>, %arg8: memref<2x8xbf16, #tpu.memory_space<vmem>>, %arg9: memref<2x8xi32, #tpu.memory_space<vmem>>, %arg10: memref<2x8xbf16, #tpu.memory_space<vmem>>, %arg11: memref<2x1xi32, #tpu.memory_space<vmem>>, %arg12: memref<2x1xi32, #tpu.memory_space<vmem>>, %arg13: memref<1x8x128xf32, #tpu.memory_space<vmem>>, %arg14: memref<32x128xf32, #tpu.memory_space<vmem>>, %arg15: memref<32x128xf32, #tpu.memory_space<vmem>>, %arg16: memref<8xf32, #tpu.memory_space<smem>>) attributes {dimension_semantics = [#tpu.dimension_semantics<parallel>, #tpu.dimension_semantics<arbitrary>], iteration_bounds = array<i64: 2, 2>, scalar_prefetch = 0 : i64, scratch_operands = 3 : i64, tpu.core_type = #tpu.core_type<tc>, window_params = [{transform_indices = @transform_0, window_bounds = array<i64: 2, 32, 128>}, {transform_indices = @transform_1, window_bounds = array<i64: 2, 32, 128>}, {transform_indices = @transform_2, window_bounds = array<i64: 2, 32, 128>}, {transform_indices = @transform_3, window_bounds = array<i64: 2, 128>}, {transform_indices = @transform_4, window_bounds = array<i64: 2, 128>}, {pipeline_mode = #tpu.pipeline_mode<synchronous>, transform_indices = @transform_5, window_bounds = array<i64: 2, 8>}, {pipeline_mode = #tpu.pipeline_mode<synchronous>, transform_indices = @transform_6, window_bounds = array<i64: 2, 8>}, {pipeline_mode = #tpu.pipeline_mode<synchronous>, transform_indices = @transform_7, window_bounds = array<i64: 2, 8>}, {pipeline_mode = #tpu.pipeline_mode<synchronous>, transform_indices = @transform_8, window_bounds = array<i64: 2, 8>}, {pipeline_mode = #tpu.pipeline_mode<synchronous>, transform_indices = @transform_9, window_bounds = array<i64: 2, 1>}, {pipeline_mode = #tpu.pipeline_mode<synchronous>, transform_indices = @transform_10, window_bounds = array<i64: 2, 1>}, {transform_indices = @transform_11, window_bounds = array<i64: 1, 8, 128>}]} {
    %c0 = arith.constant 0 : index
    %c0_0 = arith.constant 0 : index
    %0 = vector.load %arg12[%c0, %c0_0] : memref<2x1xi32, #tpu.memory_space<vmem>>, vector<2x1xi32>
    %c2_i32 = arith.constant 2 : i32
    %1 = arith.muli %arg0, %c2_i32 : i32
    %2 = arith.addi %1, %arg1 : i32
    %c0_i32 = arith.constant 0 : i32
    %3 = arith.cmpi eq, %arg1, %c0_i32 : i32
    %4 = arith.extui %3 : i1 to i32
    %c0_i32_1 = arith.constant 0 : i32
    %5 = arith.cmpi ne, %4, %c0_i32_1 : i32
    scf.if %5 {
      %cst_36 = arith.constant 0.000000e+00 : f32
      %68 = vector.broadcast %cst_36 : f32 to vector<32x128xf32>
      %c0_37 = arith.constant 0 : index
      %c0_38 = arith.constant 0 : index
      %69 = vector.load %arg14[%c0_37, %c0_38] : memref<32x128xf32, #tpu.memory_space<vmem>>, vector<32x128xf32>
      tpu.vector_store %arg14[%c0_37, %c0_38], %68 {strides = array<i32>} : memref<32x128xf32, #tpu.memory_space<vmem>>, vector<32x128xf32>,
      %cst_39 = arith.constant 0.000000e+00 : f32
      %70 = vector.broadcast %cst_39 : f32 to vector<32x128xf32>
      %c0_40 = arith.constant 0 : index
      %c0_41 = arith.constant 0 : index
      %71 = vector.load %arg15[%c0_40, %c0_41] : memref<32x128xf32, #tpu.memory_space<vmem>>, vector<32x128xf32>
      tpu.vector_store %arg15[%c0_40, %c0_41], %70 {strides = array<i32>} : memref<32x128xf32, #tpu.memory_space<vmem>>, vector<32x128xf32>,
      %cst_42 = arith.constant 0.000000e+00 : f32
      %c0_43 = arith.constant 0 : index
      %72 = memref.load %arg16[%c0_43] : memref<8xf32, #tpu.memory_space<smem>>
      memref.store %cst_42, %arg16[%c0_43] : memref<8xf32, #tpu.memory_space<smem>>
      %cst_44 = arith.constant 0.000000e+00 : f32
      %c1 = arith.constant 1 : index
      %73 = memref.load %arg16[%c1] : memref<8xf32, #tpu.memory_space<smem>>
      memref.store %cst_44, %arg16[%c1] : memref<8xf32, #tpu.memory_space<smem>>
      %cst_45 = arith.constant 0.000000e+00 : f32
      %c2 = arith.constant 2 : index
      %74 = memref.load %arg16[%c2] : memref<8xf32, #tpu.memory_space<smem>>
      memref.store %cst_45, %arg16[%c2] : memref<8xf32, #tpu.memory_space<smem>>
      %cst_46 = arith.constant 0.000000e+00 : f32
      %c3 = arith.constant 3 : index
      %75 = memref.load %arg16[%c3] : memref<8xf32, #tpu.memory_space<smem>>
      memref.store %cst_46, %arg16[%c3] : memref<8xf32, #tpu.memory_space<smem>>
      %cst_47 = arith.constant 0.000000e+00 : f32
      %c4 = arith.constant 4 : index
      %76 = memref.load %arg16[%c4] : memref<8xf32, #tpu.memory_space<smem>>
      memref.store %cst_47, %arg16[%c4] : memref<8xf32, #tpu.memory_space<smem>>
    } else {
    }
    %c0_i32_2 = arith.constant 0 : i32
    %6 = arith.cmpi eq, %arg1, %c0_i32_2 : i32
    %c0_i32_3 = arith.constant 0 : i32
    %7 = arith.cmpi eq, %arg0, %c0_i32_3 : i32
    %8 = arith.andi %6, %7 : i1
    %9 = arith.extui %8 : i1 to i32
    %c0_i32_4 = arith.constant 0 : i32
    %10 = arith.cmpi ne, %9, %c0_i32_4 : i32
    scf.if %10 {
      %c0_36 = arith.constant 0 : index
      %c0_37 = arith.constant 0 : index
      %68 = vector.load %arg11[%c0_36, %c0_37] : memref<2x1xi32, #tpu.memory_space<vmem>>, vector<2x1xi32>
      %69 = tpu.iota {dimensions = array<i32: 1>} : vector<2x8xi32>
      %70 = vector.broadcast %68 : vector<2x1xi32> to vector<2x8xi32>
      %71 = arith.cmpi slt, %69, %70 : vector<2x8xi32>
      %c0_38 = arith.constant 0 : index
      %c0_39 = arith.constant 0 : index
      %72 = vector.load %arg8[%c0_38, %c0_39] : memref<2x8xbf16, #tpu.memory_space<vmem>>, vector<2x8xbf16>
      %73 = arith.extf %72 : vector<2x8xbf16> to vector<2x8xf32>
      %c0_40 = arith.constant 0 : index
      %c0_41 = arith.constant 0 : index
      %74 = vector.load %arg7[%c0_40, %c0_41] : memref<2x8xf32, #tpu.memory_space<vmem>>, vector<2x8xf32>
      %75 = arith.subf %73, %74 : vector<2x8xf32>
      %c0_42 = arith.constant 0 : index
      %c0_43 = arith.constant 0 : index
      %76 = vector.load %arg10[%c0_42, %c0_43] : memref<2x8xbf16, #tpu.memory_space<vmem>>, vector<2x8xbf16>
      %77 = arith.extf %76 : vector<2x8xbf16> to vector<2x8xf32>
      %c0_44 = arith.constant 0 : index
      %c0_45 = arith.constant 0 : index
      %78 = vector.load %arg9[%c0_44, %c0_45] : memref<2x8xi32, #tpu.memory_space<vmem>>, vector<2x8xi32>
      %79 = arith.sitofp %78 : vector<2x8xi32> to vector<2x8xf32>
      %cst_46 = arith.constant 1.000000e+00 : f32
      %80 = vector.broadcast %cst_46 : f32 to vector<2x8xf32>
      %81 = arith.addf %79, %80 : vector<2x8xf32>
      %82 = math.log %81 : vector<2x8xf32>
      %83 = arith.subf %77, %82 : vector<2x8xf32>
      %84 = arith.mulf %75, %75 : vector<2x8xf32>
      %cst_47 = arith.constant 0.000000e+00 : f32
      %85 = vector.broadcast %cst_47 : f32 to vector<2x8xf32>
      %86 = arith.select %71, %84, %85 : vector<2x8xi1>, vector<2x8xf32>
      %87 = vector.shape_cast %86 : vector<2x8xf32> to vector<1x2x8xf32>
      %cst_48 = arith.constant dense<0.000000e+00> : vector<1xf32>
      %88 = vector.multi_reduction <add>, %87, %cst_48 [1, 2] : vector<1x2x8xf32> to vector<1xf32>
      %89 = vector.shape_cast %88 : vector<1xf32> to vector<1x1x1xf32>
      %90 = vector.extract %89[0, 0, 0] : f32 from vector<1x1x1xf32>
      %c1 = arith.constant 1 : index
      %91 = memref.load %arg16[%c1] : memref<8xf32, #tpu.memory_space<smem>>
      memref.store %90, %arg16[%c1] : memref<8xf32, #tpu.memory_space<smem>>
      %92 = arith.mulf %83, %83 : vector<2x8xf32>
      %cst_49 = arith.constant 0.000000e+00 : f32
      %93 = vector.broadcast %cst_49 : f32 to vector<2x8xf32>
      %94 = arith.select %71, %92, %93 : vector<2x8xi1>, vector<2x8xf32>
      %95 = vector.shape_cast %94 : vector<2x8xf32> to vector<1x2x8xf32>
      %cst_50 = arith.constant dense<0.000000e+00> : vector<1xf32>
      %96 = vector.multi_reduction <add>, %95, %cst_50 [1, 2] : vector<1x2x8xf32> to vector<1xf32>
      %97 = vector.shape_cast %96 : vector<1xf32> to vector<1x1x1xf32>
      %98 = vector.extract %97[0, 0, 0] : f32 from vector<1x1x1xf32>
      %c2 = arith.constant 2 : index
      %99 = memref.load %arg16[%c2] : memref<8xf32, #tpu.memory_space<smem>>
      memref.store %98, %arg16[%c2] : memref<8xf32, #tpu.memory_space<smem>>
      %100 = arith.sitofp %0 : vector<2x1xi32> to vector<2x1xf32>
      %101 = vector.shape_cast %100 : vector<2x1xf32> to vector<1x2x1xf32>
      %cst_51 = arith.constant dense<0.000000e+00> : vector<1xf32>
      %102 = vector.multi_reduction <add>, %101, %cst_51 [1, 2] : vector<1x2x1xf32> to vector<1xf32>
      %103 = vector.shape_cast %102 : vector<1xf32> to vector<1x1x1xf32>
      %104 = vector.extract %103[0, 0, 0] : f32 from vector<1x1x1xf32>
      %c3 = arith.constant 3 : index
      %105 = memref.load %arg16[%c3] : memref<8xf32, #tpu.memory_space<smem>>
      memref.store %104, %arg16[%c3] : memref<8xf32, #tpu.memory_space<smem>>
      %106 = arith.sitofp %68 : vector<2x1xi32> to vector<2x1xf32>
      %107 = vector.shape_cast %106 : vector<2x1xf32> to vector<1x2x1xf32>
      %cst_52 = arith.constant dense<0.000000e+00> : vector<1xf32>
      %108 = vector.multi_reduction <add>, %107, %cst_52 [1, 2] : vector<1x2x1xf32> to vector<1xf32>
      %109 = vector.shape_cast %108 : vector<1xf32> to vector<1x1x1xf32>
      %110 = vector.extract %109[0, 0, 0] : f32 from vector<1x1x1xf32>
      %c4 = arith.constant 4 : index
      %111 = memref.load %arg16[%c4] : memref<8xf32, #tpu.memory_space<smem>>
      memref.store %110, %arg16[%c4] : memref<8xf32, #tpu.memory_space<smem>>
    } else {
    }
    %c128_i32 = arith.constant 128 : i32
    %11 = arith.muli %2, %c128_i32 : i32
    %12 = tpu.iota {dimensions = array<i32: 1>} : vector<2x128xi32>
    %13 = vector.broadcast %11 : i32 to vector<2x128xi32>
    %14 = arith.addi %13, %12 : vector<2x128xi32>
    %15 = vector.broadcast %0 : vector<2x1xi32> to vector<2x128xi32>
    %16 = arith.cmpi slt, %14, %15 : vector<2x128xi32>
    %c0_5 = arith.constant 0 : index
    %c0_6 = arith.constant 0 : index
    %17 = vector.load %arg6[%c0_5, %c0_6] : memref<2x128xbf16, #tpu.memory_space<vmem>>, vector<2x128xbf16>
    %18 = arith.extf %17 : vector<2x128xbf16> to vector<2x128xf32>
    %c0_7 = arith.constant 0 : index
    %c0_8 = arith.constant 0 : index
    %19 = vector.load %arg5[%c0_7, %c0_8] : memref<2x128xf32, #tpu.memory_space<vmem>>, vector<2x128xf32>
    %20 = arith.subf %18, %19 : vector<2x128xf32>
    %c0_9 = arith.constant 0 : index
    %21 = memref.load %arg16[%c0_9] : memref<8xf32, #tpu.memory_space<smem>>
    %22 = arith.mulf %20, %20 : vector<2x128xf32>
    %cst = arith.constant 0.000000e+00 : f32
    %23 = vector.broadcast %cst : f32 to vector<2x128xf32>
    %24 = arith.select %16, %22, %23 : vector<2x128xi1>, vector<2x128xf32>
    %25 = vector.shape_cast %24 : vector<2x128xf32> to vector<1x2x128xf32>
    %cst_10 = arith.constant dense<0.000000e+00> : vector<1xf32>
    %26 = vector.multi_reduction <add>, %25, %cst_10 [1, 2] : vector<1x2x128xf32> to vector<1xf32>
    %27 = vector.shape_cast %26 : vector<1xf32> to vector<1x1x1xf32>
    %28 = vector.extract %27[0, 0, 0] : f32 from vector<1x1x1xf32>
    %29 = arith.addf %21, %28 : f32
    %c0_11 = arith.constant 0 : index
    %30 = memref.load %arg16[%c0_11] : memref<8xf32, #tpu.memory_space<smem>>
    memref.store %29, %arg16[%c0_11] : memref<8xf32, #tpu.memory_space<smem>>
    %c32_i32 = arith.constant 32 : i32
    %31 = arith.muli %2, %c32_i32 : i32
    %32 = tpu.iota {dimensions = array<i32: 1>} : vector<2x32x128xi32>
    %33 = vector.broadcast %31 : i32 to vector<2x32x128xi32>
    %34 = arith.addi %33, %32 : vector<2x32x128xi32>
    %35 = tpu.iota {dimensions = array<i32: 2>} : vector<2x32x128xi32>
    %c128_i32_12 = arith.constant 128 : i32
    %36 = vector.broadcast %c128_i32_12 : i32 to vector<2x32x128xi32>
    %37 = arith.muli %34, %36 : vector<2x32x128xi32>
    %38 = arith.addi %37, %35 : vector<2x32x128xi32>
    %39 = vector.shape_cast %0 : vector<2x1xi32> to vector<2x1x1xi32>
    %c32_i32_13 = arith.constant 32 : i32
    %40 = vector.broadcast %c32_i32_13 : i32 to vector<2x1x1xi32>
    %41 = arith.muli %39, %40 : vector<2x1x1xi32>
    %42 = vector.broadcast %41 : vector<2x1x1xi32> to vector<2x32x128xi32>
    %43 = arith.cmpi slt, %38, %42 : vector<2x32x128xi32>
    %c0_14 = arith.constant 0 : index
    %c0_15 = arith.constant 0 : index
    %c0_16 = arith.constant 0 : index
    %44 = vector.load %arg2[%c0_14, %c0_15, %c0_16] : memref<2x32x128xf32, #tpu.memory_space<vmem>>, vector<2x32x128xf32>
    %c0_17 = arith.constant 0 : index
    %c0_18 = arith.constant 0 : index
    %c0_19 = arith.constant 0 : index
    %45 = vector.load %arg3[%c0_17, %c0_18, %c0_19] : memref<2x32x128xbf16, #tpu.memory_space<vmem>>, vector<2x32x128xbf16>
    %46 = arith.extf %45 : vector<2x32x128xbf16> to vector<2x32x128xf32>
    %47 = arith.subf %46, %44 : vector<2x32x128xf32>
    %48 = math.absf %47 : vector<2x32x128xf32>
    %cst_20 = arith.constant 0.000000e+00 : f32
    %49 = vector.broadcast %cst_20 : f32 to vector<2x32x128xf32>
    %50 = arith.select %43, %48, %49 : vector<2x32x128xi1>, vector<2x32x128xf32>
    %c0_21 = arith.constant 0 : index
    %c0_22 = arith.constant 0 : index
    %c0_23 = arith.constant 0 : index
    %51 = vector.load %arg4[%c0_21, %c0_22, %c0_23] : memref<2x32x128xbf16, #tpu.memory_space<vmem>>, vector<2x32x128xbf16>
    %52 = arith.extf %51 : vector<2x32x128xbf16> to vector<2x32x128xf32>
    %53 = arith.subf %52, %44 : vector<2x32x128xf32>
    %54 = math.absf %53 : vector<2x32x128xf32>
    %cst_24 = arith.constant 0.000000e+00 : f32
    %55 = vector.broadcast %cst_24 : f32 to vector<2x32x128xf32>
    %56 = arith.select %43, %54, %55 : vector<2x32x128xi1>, vector<2x32x128xf32>
    %c0_25 = arith.constant 0 : index
    %c0_26 = arith.constant 0 : index
    %57 = vector.load %arg14[%c0_25, %c0_26] : memref<32x128xf32, #tpu.memory_space<vmem>>, vector<32x128xf32>
    %cst_27 = arith.constant dense<0.000000e+00> : vector<32x128xf32>
    %58 = vector.multi_reduction <add>, %50, %cst_27 [0] : vector<2x32x128xf32> to vector<32x128xf32>
    %59 = arith.addf %57, %58 : vector<32x128xf32>
    %c0_28 = arith.constant 0 : index
    %c0_29 = arith.constant 0 : index
    %60 = vector.load %arg14[%c0_28, %c0_29] : memref<32x128xf32, #tpu.memory_space<vmem>>, vector<32x128xf32>
    tpu.vector_store %arg14[%c0_28, %c0_29], %59 {strides = array<i32>} : memref<32x128xf32, #tpu.memory_space<vmem>>, vector<32x128xf32>,
    %c0_30 = arith.constant 0 : index
    %c0_31 = arith.constant 0 : index
    %61 = vector.load %arg15[%c0_30, %c0_31] : memref<32x128xf32, #tpu.memory_space<vmem>>, vector<32x128xf32>
    %cst_32 = arith.constant dense<0.000000e+00> : vector<32x128xf32>
    %62 = vector.multi_reduction <add>, %56, %cst_32 [0] : vector<2x32x128xf32> to vector<32x128xf32>
    %63 = arith.addf %61, %62 : vector<32x128xf32>
    %c0_33 = arith.constant 0 : index
    %c0_34 = arith.constant 0 : index
    %64 = vector.load %arg15[%c0_33, %c0_34] : memref<32x128xf32, #tpu.memory_space<vmem>>, vector<32x128xf32>
    tpu.vector_store %arg15[%c0_33, %c0_34], %63 {strides = array<i32>} : memref<32x128xf32, #tpu.memory_space<vmem>>, vector<32x128xf32>,
    %c1_i32 = arith.constant 1 : i32
    %65 = arith.cmpi eq, %arg1, %c1_i32 : i32
    %66 = arith.extui %65 : i1 to i32
    %c0_i32_35 = arith.constant 0 : i32
    %67 = arith.cmpi ne, %66, %c0_i32_35 : i32
    scf.if %67 {
      %c0_36 = arith.constant 0 : index
      %c0_37 = arith.constant 0 : index
      %68 = vector.load %arg14[%c0_36, %c0_37] : memref<32x128xf32, #tpu.memory_space<vmem>>, vector<32x128xf32>
      %69 = vector.shape_cast %68 : vector<32x128xf32> to vector<1x32x128xf32>
      %cst_38 = arith.constant dense<0.000000e+00> : vector<1xf32>
      %70 = vector.multi_reduction <add>, %69, %cst_38 [1, 2] : vector<1x32x128xf32> to vector<1xf32>
      %71 = vector.shape_cast %70 : vector<1xf32> to vector<1x1x1xf32>
      %72 = vector.extract %71[0, 0, 0] : f32 from vector<1x1x1xf32>
      %c0_39 = arith.constant 0 : index
      %c0_40 = arith.constant 0 : index
      %73 = vector.load %arg15[%c0_39, %c0_40] : memref<32x128xf32, #tpu.memory_space<vmem>>, vector<32x128xf32>
      %74 = vector.shape_cast %73 : vector<32x128xf32> to vector<1x32x128xf32>
      %cst_41 = arith.constant dense<0.000000e+00> : vector<1xf32>
      %75 = vector.multi_reduction <add>, %74, %cst_41 [1, 2] : vector<1x32x128xf32> to vector<1xf32>
      %76 = vector.shape_cast %75 : vector<1xf32> to vector<1x1x1xf32>
      %77 = vector.extract %76[0, 0, 0] : f32 from vector<1x1x1xf32>
      %c0_42 = arith.constant 0 : index
      %78 = memref.load %arg16[%c0_42] : memref<8xf32, #tpu.memory_space<smem>>
      %c1 = arith.constant 1 : index
      %79 = memref.load %arg16[%c1] : memref<8xf32, #tpu.memory_space<smem>>
      %c2 = arith.constant 2 : index
      %80 = memref.load %arg16[%c2] : memref<8xf32, #tpu.memory_space<smem>>
      %c3 = arith.constant 3 : index
      %81 = memref.load %arg16[%c3] : memref<8xf32, #tpu.memory_space<smem>>
      %c4 = arith.constant 4 : index
      %82 = memref.load %arg16[%c4] : memref<8xf32, #tpu.memory_space<smem>>
      %83 = tpu.iota {dimensions = array<i32: 1>} : vector<1x8x128xi32>
      %cst_43 = arith.constant 0.000000e+00 : f32
      %84 = vector.broadcast %cst_43 : f32 to vector<1x8x128xf32>
      %c0_i32_44 = arith.constant 0 : i32
      %85 = vector.broadcast %c0_i32_44 : i32 to vector<1x8x128xi32>
      %86 = arith.cmpi eq, %83, %85 : vector<1x8x128xi32>
      %87 = vector.broadcast %72 : f32 to vector<1x8x128xf32>
      %88 = arith.select %86, %87, %84 : vector<1x8x128xi1>, vector<1x8x128xf32>
      %c1_i32_45 = arith.constant 1 : i32
      %89 = vector.broadcast %c1_i32_45 : i32 to vector<1x8x128xi32>
      %90 = arith.cmpi eq, %83, %89 : vector<1x8x128xi32>
      %91 = vector.broadcast %77 : f32 to vector<1x8x128xf32>
      %92 = arith.select %90, %91, %88 : vector<1x8x128xi1>, vector<1x8x128xf32>
      %c2_i32_46 = arith.constant 2 : i32
      %93 = vector.broadcast %c2_i32_46 : i32 to vector<1x8x128xi32>
      %94 = arith.cmpi eq, %83, %93 : vector<1x8x128xi32>
      %95 = vector.broadcast %78 : f32 to vector<1x8x128xf32>
      %96 = arith.select %94, %95, %92 : vector<1x8x128xi1>, vector<1x8x128xf32>
      %c3_i32 = arith.constant 3 : i32
      %97 = vector.broadcast %c3_i32 : i32 to vector<1x8x128xi32>
      %98 = arith.cmpi eq, %83, %97 : vector<1x8x128xi32>
      %99 = vector.broadcast %79 : f32 to vector<1x8x128xf32>
      %100 = arith.select %98, %99, %96 : vector<1x8x128xi1>, vector<1x8x128xf32>
      %c4_i32 = arith.constant 4 : i32
      %101 = vector.broadcast %c4_i32 : i32 to vector<1x8x128xi32>
      %102 = arith.cmpi eq, %83, %101 : vector<1x8x128xi32>
      %103 = vector.broadcast %80 : f32 to vector<1x8x128xf32>
      %104 = arith.select %102, %103, %100 : vector<1x8x128xi1>, vector<1x8x128xf32>
      %c5_i32 = arith.constant 5 : i32
      %105 = vector.broadcast %c5_i32 : i32 to vector<1x8x128xi32>
      %106 = arith.cmpi eq, %83, %105 : vector<1x8x128xi32>
      %107 = vector.broadcast %81 : f32 to vector<1x8x128xf32>
      %108 = arith.select %106, %107, %104 : vector<1x8x128xi1>, vector<1x8x128xf32>
      %c6_i32 = arith.constant 6 : i32
      %109 = vector.broadcast %c6_i32 : i32 to vector<1x8x128xi32>
      %110 = arith.cmpi eq, %83, %109 : vector<1x8x128xi32>
      %111 = vector.broadcast %82 : f32 to vector<1x8x128xf32>
      %112 = arith.select %110, %111, %108 : vector<1x8x128xi1>, vector<1x8x128xf32>
      %c0_47 = arith.constant 0 : index
      %c0_48 = arith.constant 0 : index
      %c0_49 = arith.constant 0 : index
      %113 = vector.load %arg13[%c0_47, %c0_48, %c0_49] : memref<1x8x128xf32, #tpu.memory_space<vmem>>, vector<1x8x128xf32>
      tpu.vector_store %arg13[%c0_47, %c0_48, %c0_49], %112 {strides = array<i32>} : memref<1x8x128xf32, #tpu.memory_space<vmem>>, vector<1x8x128xf32>,
    } else {
    }
    return
  }
  func.func @transform_0(%arg0: i32, %arg1: i32) -> (i32, i32, i32) {
    %c2_i32 = arith.constant 2 : i32
    %0 = arith.muli %arg0, %c2_i32 : i32
    %1 = arith.addi %0, %arg1 : i32
    %c2_i32_0 = arith.constant 2 : i32
    %2 = arith.minsi %1, %c2_i32_0 : i32
    %c0_i32 = arith.constant 0 : i32
    %c0_i32_1 = arith.constant 0 : i32
    %c0_i32_2 = arith.constant 0 : i32
    return %c0_i32, %2, %c0_i32_1 : i32, i32, i32
  }
  func.func @transform_1(%arg0: i32, %arg1: i32) -> (i32, i32, i32) {
    %c2_i32 = arith.constant 2 : i32
    %0 = arith.muli %arg0, %c2_i32 : i32
    %1 = arith.addi %0, %arg1 : i32
    %c2_i32_0 = arith.constant 2 : i32
    %2 = arith.minsi %1, %c2_i32_0 : i32
    %c0_i32 = arith.constant 0 : i32
    %c0_i32_1 = arith.constant 0 : i32
    %c0_i32_2 = arith.constant 0 : i32
    return %c0_i32, %2, %c0_i32_1 : i32, i32, i32
  }
  func.func @transform_2(%arg0: i32, %arg1: i32) -> (i32, i32, i32) {
    %c2_i32 = arith.constant 2 : i32
    %0 = arith.muli %arg0, %c2_i32 : i32
    %1 = arith.addi %0, %arg1 : i32
    %c2_i32_0 = arith.constant 2 : i32
    %2 = arith.minsi %1, %c2_i32_0 : i32
    %c0_i32 = arith.constant 0 : i32
    %c0_i32_1 = arith.constant 0 : i32
    %c0_i32_2 = arith.constant 0 : i32
    return %c0_i32, %2, %c0_i32_1 : i32, i32, i32
  }
  func.func @transform_3(%arg0: i32, %arg1: i32) -> (i32, i32) {
    %c2_i32 = arith.constant 2 : i32
    %0 = arith.muli %arg0, %c2_i32 : i32
    %1 = arith.addi %0, %arg1 : i32
    %c2_i32_0 = arith.constant 2 : i32
    %2 = arith.minsi %1, %c2_i32_0 : i32
    %c0_i32 = arith.constant 0 : i32
    %c0_i32_1 = arith.constant 0 : i32
    return %c0_i32, %2 : i32, i32
  }
  func.func @transform_4(%arg0: i32, %arg1: i32) -> (i32, i32) {
    %c2_i32 = arith.constant 2 : i32
    %0 = arith.muli %arg0, %c2_i32 : i32
    %1 = arith.addi %0, %arg1 : i32
    %c2_i32_0 = arith.constant 2 : i32
    %2 = arith.minsi %1, %c2_i32_0 : i32
    %c0_i32 = arith.constant 0 : i32
    %c0_i32_1 = arith.constant 0 : i32
    return %c0_i32, %2 : i32, i32
  }
  func.func @transform_5(%arg0: i32, %arg1: i32) -> (i32, i32) {
    %c0_i32 = arith.constant 0 : i32
    %c0_i32_0 = arith.constant 0 : i32
    %c0_i32_1 = arith.constant 0 : i32
    return %c0_i32, %c0_i32_0 : i32, i32
  }
  func.func @transform_6(%arg0: i32, %arg1: i32) -> (i32, i32) {
    %c0_i32 = arith.constant 0 : i32
    %c0_i32_0 = arith.constant 0 : i32
    %c0_i32_1 = arith.constant 0 : i32
    return %c0_i32, %c0_i32_0 : i32, i32
  }
  func.func @transform_7(%arg0: i32, %arg1: i32) -> (i32, i32) {
    %c0_i32 = arith.constant 0 : i32
    %c0_i32_0 = arith.constant 0 : i32
    %c0_i32_1 = arith.constant 0 : i32
    return %c0_i32, %c0_i32_0 : i32, i32
  }
  func.func @transform_8(%arg0: i32, %arg1: i32) -> (i32, i32) {
    %c0_i32 = arith.constant 0 : i32
    %c0_i32_0 = arith.constant 0 : i32
    %c0_i32_1 = arith.constant 0 : i32
    return %c0_i32, %c0_i32_0 : i32, i32
  }
  func.func @transform_9(%arg0: i32, %arg1: i32) -> (i32, i32) {
    %c0_i32 = arith.constant 0 : i32
    %c0_i32_0 = arith.constant 0 : i32
    %c0_i32_1 = arith.constant 0 : i32
    return %c0_i32, %c0_i32_0 : i32, i32
  }
  func.func @transform_10(%arg0: i32, %arg1: i32) -> (i32, i32) {
    %c0_i32 = arith.constant 0 : i32
    %c0_i32_0 = arith.constant 0 : i32
    %c0_i32_1 = arith.constant 0 : i32
    return %c0_i32, %c0_i32_0 : i32, i32
  }
  func.func @transform_11(%arg0: i32, %arg1: i32) -> (i32, i32, i32) {
    %c0_i32 = arith.constant 0 : i32
    %c0_i32_0 = arith.constant 0 : i32
    %c0_i32_1 = arith.constant 0 : i32
    return %arg0, %c0_i32, %c0_i32_0 : i32, i32, i32
  }
}

</mosaic_0001>

<llo_original>
// kernel: tpu_custom_call.1
$region0: #{tpu_custom_call.1}
  #allocation0 [shape = 'u32[]', space=smem, size = 0x4, offset = 0x4, fixed_abs, tag = 'smem constant byte address 0x4 - core index']
  #allocation1 [shape = 'u32[144,128]{1,0:T(1,128)}', space=vmem, size = 0x12000, scoped, tag = 'internal scratch']
  #allocation2 [shape = 'f32[32,128]{1,0:T(8,128)}', space=vmem, size = 0x4000, scoped, tag = 'scratch operand']
  #allocation3 [shape = 'f32[32,128]{1,0:T(8,128)}', space=vmem, size = 0x4000, scoped, tag = 'scratch operand']
  #allocation4 [shape = 'f32[8]{0:T(128)}', space=smem, size = 0x200, scoped, tag = 'scratch operand']
  #allocation12 [shape = 's32[]', space=sflag, size = 0x4, offset = 0, fixed_abs, tag = 'sflag constant byte address 0x0 - dummy sync flag']
  #allocation14 [shape = 's32[]', space=sflag, size = 0x4, offset = 0, fixed_abs, tag = 'sflag constant byte address 0x0 - dummy sync flag']
  #allocation16 [shape = 's32[]', space=sflag, size = 0x4, offset = 0, fixed_abs, tag = 'sflag constant byte address 0x0 - dummy sync flag']
  %s0 = inlined_call_operand.hbm [shape: f32[2,96,128], index: 0, kind: input, shape index: {}]
  %s1 = inlined_call_operand.hbm [shape: bf16[2,96,128], index: 1, kind: input, shape index: {}]
  %s2 = inlined_call_operand.hbm [shape: bf16[2,96,128], index: 2, kind: input, shape index: {}]
  %s3 = inlined_call_operand.vmem [shape: f32[2,384], index: 3, kind: input, shape index: {}]
  %s4 = inlined_call_operand.vmem [shape: bf16[2,384], index: 4, kind: input, shape index: {}]
  %s5 = inlined_call_operand.vmem [shape: f32[2,8], index: 5, kind: input, shape index: {}]
  %s6 = inlined_call_operand.vmem [shape: bf16[2,8], index: 6, kind: input, shape index: {}]
  %s7 = inlined_call_operand.vmem [shape: s32[2,8], index: 7, kind: input, shape index: {}]
  %s8 = inlined_call_operand.vmem [shape: bf16[2,8], index: 8, kind: input, shape index: {}]
  %s9 = inlined_call_operand.vmem [shape: s32[2,1], index: 9, kind: input, shape index: {}]
  %s10 = inlined_call_operand.vmem [shape: s32[2,1], index: 10, kind: input, shape index: {}]
  %s11 = inlined_call_operand.hbm [shape: f32[2,8,128], index: 11, kind: output, shape index: {}]
  %s12 = sld [smem:[#allocation0]]
  $region101: #{tpu_custom_call.1} parent=0
    _
  %s14 = ssub.s32 1, %s12
  %s15 = scalar_select 0, %s14, %s12
  $region1: #{tpu_custom_call.1} parent=0
    #allocation5 [shape = 'u8[65536]{0}', space=vmem, size = 0x10000, scoped, tag = 'input window, operand 0']
    #allocation6 [shape = 's32[2]{0}', space=sflag, size = 0x8, scoped, tag = 'scoped memory for tpu_custom_call.1']
    #allocation7 [shape = 's32[2]{0}', space=sflag, size = 0x8, scoped, tag = 'scoped memory for tpu_custom_call.1']
    #allocation8 [shape = 'u8[32768]{0}', space=vmem, size = 0x8000, scoped, tag = 'input window, operand 1']
    #allocation9 [shape = 's32[2]{0}', space=sflag, size = 0x8, scoped, tag = 'scoped memory for tpu_custom_call.1']
    #allocation10 [shape = 'u8[32768]{0}', space=vmem, size = 0x8000, scoped, tag = 'input window, operand 2']
    #allocation11 [shape = 'u8[8192]{0}', space=vmem, size = 0x2000, scoped, tag = 'output window, operand 0']
    %16 = vsyncpa [#allocation6], 0
    %s17 = scalar_lea.sflag [#allocation6], 1
    %18 = vsyncpa %s17, 0
    %19 = vsyncpa [#allocation9], 0
    %s20 = scalar_lea.sflag [#allocation9], 1
    %21 = vsyncpa %s20, 0
    %22 = vsyncpa [#allocation7], 0
    %s23 = scalar_lea.sflag [#allocation7], 1
    %24 = vsyncpa %s23, 0
    loop: start=0, step=1, limit=6
    $region2: #{tpu_custom_call.1} parent=1 // loop_pre_header
      _
    $region3: #{tpu_custom_call.1} parent=1 // loop_header
      %s26 = sphi 0, %s30
      %p27 = scmp.ge.s32.totalorder %s26, 6
      %s33 = sphi 0, %s45
      %s34 = sphi 0, %s41
      %s35 = sphi 0, %s33
      %s36 = sphi 0, %s34
      %s37 = sphi 0, %s35
      %s38 = sphi 0, %s36
      %s56 = sphi 0, %s58
      %s59 = sphi 0, %s56
      %s60 = sphi 0, %s59
      %s76 = sphi 0, %s60
      %s90 = sphi 0, %s92
      %s93 = sphi 0, %s90
      %s94 = sphi 0, %s93
      %s110 = sphi 0, %s94
      %s124 = sphi 0, %s126
      %s127 = sphi 0, %s124
      %s128 = sphi 0, %s127
      %s144 = sphi 0, %s128
      %s158 = sphi 0, %s160
      %s161 = sphi 0, %s158
      %s162 = sphi 0, %s161
      %s178 = sphi 0, %s162
      %s192 = sphi 0, %s194
      %s195 = sphi 0, %s192
      %s196 = sphi 0, %s195
      %s212 = sphi 0, %s196
      %s216 = sphi 0, %s216
      %s218 = sphi 0, %s216
      %s219 = sphi 0, %s218
      %s233 = sphi 0, %s219
      %s237 = sphi 0, %s237
      %s239 = sphi 0, %s237
      %s240 = sphi 0, %s239
      %s254 = sphi 0, %s240
      %s258 = sphi 0, %s258
      %s260 = sphi 0, %s258
      %s261 = sphi 0, %s260
      %s275 = sphi 0, %s261
      %s279 = sphi 0, %s279
      %s281 = sphi 0, %s279
      %s282 = sphi 0, %s281
      %s296 = sphi 0, %s282
      %s300 = sphi 0, %s300
      %s302 = sphi 0, %s300
      %s303 = sphi 0, %s302
      %s317 = sphi 0, %s303
      %s321 = sphi 0, %s321
      %s323 = sphi 0, %s321
      %s324 = sphi 0, %s323
      %s338 = sphi 0, %s324
      %s344 = sphi 0, %s346
      %s347 = sphi 0, %s344
      %s348 = sphi 0, %s347
      %s364 = sphi 0, %s348
    $region4: #{tpu_custom_call.1} parent=1 // loop_header_branch
      %29 = sbr.rel (%p27) target = $region8
    $region5: #{tpu_custom_call.1} parent=1 // loop_body
      %s31 = ssub.s32 %s26, 1
      %s32 = ssub.s32 %s26, 2
      %s39 = sadd.s32 1, %s34
      %p40 = scmp.ge.s32.totalorder %s39, 2
      %s41 = scalar_select %p40, 0, %s39
      %s42 = sadd.s32 1, %s33
      %s43 = scalar_select %p40, %s42, %s33
      %p44 = scmp.ge.s32.totalorder %s43, 2
      %s45 = scalar_select %p44, 0, %s43
      %s46 = smul.u32 %s33, 2
      %s47 = sadd.s32 %s46, %s34
      %p48 = scmp.lt.s32.totalorder %s47, 2
      %s49 = scalar_select %p48, %s47, 2
      %s50 = smul.u32 %s45, 2
      %s51 = sadd.s32 %s50, %s41
      %p52 = scmp.lt.s32.totalorder %s51, 2
      %s53 = scalar_select %p52, %s51, 2
      %s54 = ssub.s32 %s49, %s53
      %p55 = scmp.eq.s32.totalorder %s54, 0
      %s57 = sadd.s32 %s56, 1
      %s58 = scalar_select %p55, %s56, %s57
      %p61 = pneg %p55
      %p62 = scmp.eq.s32.totalorder %s26, 3
      %p63 = por %p61, %p62
      %p64 = scmp.ne.s32.totalorder %s56, %s59
      %p65 = scmp.eq.s32.totalorder %s26, 0
      %p66 = por %p64, %p65
      %p67 = scmp.ne.s32.totalorder %s56, %s59
      %p68 = scmp.eq.s32.totalorder %s31, 3
      %p69 = por %p67, %p68
      %p70 = scmp.ne.s32.totalorder %s59, %s60
      %p71 = scmp.eq.s32.totalorder %s31, 0
      %p72 = por %p70, %p71
      %p73 = scmp.ne.s32.totalorder %s59, %s60
      %p74 = scmp.eq.s32.totalorder %s32, 3
      %p75 = por %p73, %p74
      %p77 = scmp.ne.s32.totalorder %s60, %s76
      %p78 = scmp.eq.s32.totalorder %s32, 0
      %p79 = por %p77, %p78
      %s80 = smul.u32 %s33, 2
      %s81 = sadd.s32 %s80, %s34
      %p82 = scmp.lt.s32.totalorder %s81, 2
      %s83 = scalar_select %p82, %s81, 2
      %s84 = smul.u32 %s45, 2
      %s85 = sadd.s32 %s84, %s41
      %p86 = scmp.lt.s32.totalorder %s85, 2
      %s87 = scalar_select %p86, %s85, 2
      %s88 = ssub.s32 %s83, %s87
      %p89 = scmp.eq.s32.totalorder %s88, 0
      %s91 = sadd.s32 %s90, 1
      %s92 = scalar_select %p89, %s90, %s91
      %p95 = pneg %p89
      %p96 = scmp.eq.s32.totalorder %s26, 3
      %p97 = por %p95, %p96
      %p98 = scmp.ne.s32.totalorder %s90, %s93
      %p99 = scmp.eq.s32.totalorder %s26, 0
      %p100 = por %p98, %p99
      %p101 = scmp.ne.s32.totalorder %s90, %s93
      %p102 = scmp.eq.s32.totalorder %s31, 3
      %p103 = por %p101, %p102
      %p104 = scmp.ne.s32.totalorder %s93, %s94
      %p105 = scmp.eq.s32.totalorder %s31, 0
      %p106 = por %p104, %p105
      %p107 = scmp.ne.s32.totalorder %s93, %s94
      %p108 = scmp.eq.s32.totalorder %s32, 3
      %p109 = por %p107, %p108
      %p111 = scmp.ne.s32.totalorder %s94, %s110
      %p112 = scmp.eq.s32.totalorder %s32, 0
      %p113 = por %p111, %p112
      %s114 = smul.u32 %s33, 2
      %s115 = sadd.s32 %s114, %s34
      %p116 = scmp.lt.s32.totalorder %s115, 2
      %s117 = scalar_select %p116, %s115, 2
      %s118 = smul.u32 %s45, 2
      %s119 = sadd.s32 %s118, %s41
      %p120 = scmp.lt.s32.totalorder %s119, 2
      %s121 = scalar_select %p120, %s119, 2
      %s122 = ssub.s32 %s117, %s121
      %p123 = scmp.eq.s32.totalorder %s122, 0
      %s125 = sadd.s32 %s124, 1
      %s126 = scalar_select %p123, %s124, %s125
      %p129 = pneg %p123
      %p130 = scmp.eq.s32.totalorder %s26, 3
      %p131 = por %p129, %p130
      %p132 = scmp.ne.s32.totalorder %s124, %s127
      %p133 = scmp.eq.s32.totalorder %s26, 0
      %p134 = por %p132, %p133
      %p135 = scmp.ne.s32.totalorder %s124, %s127
      %p136 = scmp.eq.s32.totalorder %s31, 3
      %p137 = por %p135, %p136
      %p138 = scmp.ne.s32.totalorder %s127, %s128
      %p139 = scmp.eq.s32.totalorder %s31, 0
      %p140 = por %p138, %p139
      %p141 = scmp.ne.s32.totalorder %s127, %s128
      %p142 = scmp.eq.s32.totalorder %s32, 3
      %p143 = por %p141, %p142
      %p145 = scmp.ne.s32.totalorder %s128, %s144
      %p146 = scmp.eq.s32.totalorder %s32, 0
      %p147 = por %p145, %p146
      %s148 = smul.u32 %s33, 2
      %s149 = sadd.s32 %s148, %s34
      %p150 = scmp.lt.s32.totalorder %s149, 2
      %s151 = scalar_select %p150, %s149, 2
      %s152 = smul.u32 %s45, 2
      %s153 = sadd.s32 %s152, %s41
      %p154 = scmp.lt.s32.totalorder %s153, 2
      %s155 = scalar_select %p154, %s153, 2
      %s156 = ssub.s32 %s151, %s155
      %p157 = scmp.eq.s32.totalorder %s156, 0
      %s159 = sadd.s32 %s158, 1
      %s160 = scalar_select %p157, %s158, %s159
      %p163 = pneg %p157
      %p164 = scmp.eq.s32.totalorder %s26, 3
      %p165 = por %p163, %p164
      %p166 = scmp.ne.s32.totalorder %s158, %s161
      %p167 = scmp.eq.s32.totalorder %s26, 0
      %p168 = por %p166, %p167
      %p169 = scmp.ne.s32.totalorder %s158, %s161
      %p170 = scmp.eq.s32.totalorder %s31, 3
      %p171 = por %p169, %p170
      %p172 = scmp.ne.s32.totalorder %s161, %s162
      %p173 = scmp.eq.s32.totalorder %s31, 0
      %p174 = por %p172, %p173
      %p175 = scmp.ne.s32.totalorder %s161, %s162
      %p176 = scmp.eq.s32.totalorder %s32, 3
      %p177 = por %p175, %p176
      %p179 = scmp.ne.s32.totalorder %s162, %s178
      %p180 = scmp.eq.s32.totalorder %s32, 0
      %p181 = por %p179, %p180
      %s182 = smul.u32 %s33, 2
      %s183 = sadd.s32 %s182, %s34
      %p184 = scmp.lt.s32.totalorder %s183, 2
      %s185 = scalar_select %p184, %s183, 2
      %s186 = smul.u32 %s45, 2
      %s187 = sadd.s32 %s186, %s41
      %p188 = scmp.lt.s32.totalorder %s187, 2
      %s189 = scalar_select %p188, %s187, 2
      %s190 = ssub.s32 %s185, %s189
      %p191 = scmp.eq.s32.totalorder %s190, 0
      %s193 = sadd.s32 %s192, 1
      %s194 = scalar_select %p191, %s192, %s193
      %p197 = pneg %p191
      %p198 = scmp.eq.s32.totalorder %s26, 3
      %p199 = por %p197, %p198
      %p200 = scmp.ne.s32.totalorder %s192, %s195
      %p201 = scmp.eq.s32.totalorder %s26, 0
      %p202 = por %p200, %p201
      %p203 = scmp.ne.s32.totalorder %s192, %s195
      %p204 = scmp.eq.s32.totalorder %s31, 3
      %p205 = por %p203, %p204
      %p206 = scmp.ne.s32.totalorder %s195, %s196
      %p207 = scmp.eq.s32.totalorder %s31, 0
      %p208 = por %p206, %p207
      %p209 = scmp.ne.s32.totalorder %s195, %s196
      %p210 = scmp.eq.s32.totalorder %s32, 3
      %p211 = por %p209, %p210
      %p213 = scmp.ne.s32.totalorder %s196, %s212
      %p214 = scmp.eq.s32.totalorder %s32, 0
      %p215 = por %p213, %p214
      %s217 = sadd.s32 %s216, 1
      %p220 = scmp.eq.s32.totalorder %s26, 3
      %p221 = scmp.ne.s32.totalorder %s216, %s218
      %p222 = scmp.eq.s32.totalorder %s26, 0
      %p223 = por %p221, %p222
      %p224 = scmp.ne.s32.totalorder %s216, %s218
      %p225 = scmp.eq.s32.totalorder %s31, 3
      %p226 = por %p224, %p225
      %p227 = scmp.ne.s32.totalorder %s218, %s219
      %p228 = scmp.eq.s32.totalorder %s31, 0
      %p229 = por %p227, %p228
      %p230 = scmp.ne.s32.totalorder %s218, %s219
      %p231 = scmp.eq.s32.totalorder %s32, 3
      %p232 = por %p230, %p231
      %p234 = scmp.ne.s32.totalorder %s219, %s233
      %p235 = scmp.eq.s32.totalorder %s32, 0
      %p236 = por %p234, %p235
      %s238 = sadd.s32 %s237, 1
      %p241 = scmp.eq.s32.totalorder %s26, 3
      %p242 = scmp.ne.s32.totalorder %s237, %s239
      %p243 = scmp.eq.s32.totalorder %s26, 0
      %p244 = por %p242, %p243
      %p245 = scmp.ne.s32.totalorder %s237, %s239
      %p246 = scmp.eq.s32.totalorder %s31, 3
      %p247 = por %p245, %p246
      %p248 = scmp.ne.s32.totalorder %s239, %s240
      %p249 = scmp.eq.s32.totalorder %s31, 0
      %p250 = por %p248, %p249
      %p251 = scmp.ne.s32.totalorder %s239, %s240
      %p252 = scmp.eq.s32.totalorder %s32, 3
      %p253 = por %p251, %p252
      %p255 = scmp.ne.s32.totalorder %s240, %s254
      %p256 = scmp.eq.s32.totalorder %s32, 0
      %p257 = por %p255, %p256
      %s259 = sadd.s32 %s258, 1
      %p262 = scmp.eq.s32.totalorder %s26, 3
      %p263 = scmp.ne.s32.totalorder %s258, %s260
      %p264 = scmp.eq.s32.totalorder %s26, 0
      %p265 = por %p263, %p264
      %p266 = scmp.ne.s32.totalorder %s258, %s260
      %p267 = scmp.eq.s32.totalorder %s31, 3
      %p268 = por %p266, %p267
      %p269 = scmp.ne.s32.totalorder %s260, %s261
      %p270 = scmp.eq.s32.totalorder %s31, 0
      %p271 = por %p269, %p270
      %p272 = scmp.ne.s32.totalorder %s260, %s261
      %p273 = scmp.eq.s32.totalorder %s32, 3
      %p274 = por %p272, %p273
      %p276 = scmp.ne.s32.totalorder %s261, %s275
      %p277 = scmp.eq.s32.totalorder %s32, 0
      %p278 = por %p276, %p277
      %s280 = sadd.s32 %s279, 1
      %p283 = scmp.eq.s32.totalorder %s26, 3
      %p284 = scmp.ne.s32.totalorder %s279, %s281
      %p285 = scmp.eq.s32.totalorder %s26, 0
      %p286 = por %p284, %p285
      %p287 = scmp.ne.s32.totalorder %s279, %s281
      %p288 = scmp.eq.s32.totalorder %s31, 3
      %p289 = por %p287, %p288
      %p290 = scmp.ne.s32.totalorder %s281, %s282
      %p291 = scmp.eq.s32.totalorder %s31, 0
      %p292 = por %p290, %p291
      %p293 = scmp.ne.s32.totalorder %s281, %s282
      %p294 = scmp.eq.s32.totalorder %s32, 3
      %p295 = por %p293, %p294
      %p297 = scmp.ne.s32.totalorder %s282, %s296
      %p298 = scmp.eq.s32.totalorder %s32, 0
      %p299 = por %p297, %p298
      %s301 = sadd.s32 %s300, 1
      %p304 = scmp.eq.s32.totalorder %s26, 3
      %p305 = scmp.ne.s32.totalorder %s300, %s302
      %p306 = scmp.eq.s32.totalorder %s26, 0
      %p307 = por %p305, %p306
      %p308 = scmp.ne.s32.totalorder %s300, %s302
      %p309 = scmp.eq.s32.totalorder %s31, 3
      %p310 = por %p308, %p309
      %p311 = scmp.ne.s32.totalorder %s302, %s303
      %p312 = scmp.eq.s32.totalorder %s31, 0
      %p313 = por %p311, %p312
      %p314 = scmp.ne.s32.totalorder %s302, %s303
      %p315 = scmp.eq.s32.totalorder %s32, 3
      %p316 = por %p314, %p315
      %p318 = scmp.ne.s32.totalorder %s303, %s317
      %p319 = scmp.eq.s32.totalorder %s32, 0
      %p320 = por %p318, %p319
      %s322 = sadd.s32 %s321, 1
      %p325 = scmp.eq.s32.totalorder %s26, 3
      %p326 = scmp.ne.s32.totalorder %s321, %s323
      %p327 = scmp.eq.s32.totalorder %s26, 0
      %p328 = por %p326, %p327
      %p329 = scmp.ne.s32.totalorder %s321, %s323
      %p330 = scmp.eq.s32.totalorder %s31, 3
      %p331 = por %p329, %p330
      %p332 = scmp.ne.s32.totalorder %s323, %s324
      %p333 = scmp.eq.s32.totalorder %s31, 0
      %p334 = por %p332, %p333
      %p335 = scmp.ne.s32.totalorder %s323, %s324
      %p336 = scmp.eq.s32.totalorder %s32, 3
      %p337 = por %p335, %p336
      %p339 = scmp.ne.s32.totalorder %s324, %s338
      %p340 = scmp.eq.s32.totalorder %s32, 0
      %p341 = por %p339, %p340
      %s342 = ssub.s32 %s33, %s45
      %p343 = scmp.eq.s32.totalorder %s342, 0
      %s345 = sadd.s32 %s344, 1
      %s346 = scalar_select %p343, %s344, %s345
      %p349 = pneg %p343
      %p350 = scmp.eq.s32.totalorder %s26, 3
      %p351 = por %p349, %p350
      %p352 = scmp.ne.s32.totalorder %s344, %s347
      %p353 = scmp.eq.s32.totalorder %s26, 0
      %p354 = por %p352, %p353
      %p355 = scmp.ne.s32.totalorder %s344, %s347
      %p356 = scmp.eq.s32.totalorder %s31, 3
      %p357 = por %p355, %p356
      %p358 = scmp.ne.s32.totalorder %s347, %s348
      %p359 = scmp.eq.s32.totalorder %s31, 0
      %p360 = por %p358, %p359
      %p361 = scmp.ne.s32.totalorder %s347, %s348
      %p362 = scmp.eq.s32.totalorder %s32, 3
      %p363 = por %p361, %p362
      %p365 = scmp.ne.s32.totalorder %s348, %s364
      %p366 = scmp.eq.s32.totalorder %s32, 0
      %p367 = por %p365, %p366
      %p368 = scmp.le.s32.totalorder 1, %s26
      %p369 = scmp.lt.s32.totalorder %s26, 5
      %p370 = pnand %p368, %p369
      %p371 = pneg %p370
      // Predicated region
      $region9: #{tpu_custom_call.1} parent=5 // pred_check
        _
      $region10: #{tpu_custom_call.1} parent=5 // pred_check_branch
        %373 = sbr.rel (%p370) target = $region12
      $region11: #{tpu_custom_call.1} parent=5 // pred_region
        %s374 = ssub.s32 %s26, 1
        // Predicated region
        $region13: #{tpu_custom_call.1} parent=11 // pred_check
          %p375 = pneg %p229
        $region14: #{tpu_custom_call.1} parent=11 // pred_check_branch
          %377 = sbr.rel (%p375) target = $region16
        $region15: #{tpu_custom_call.1} parent=11 // pred_region
          _
        $region16: #{tpu_custom_call.1} parent=11 // pred_fallthru
          _
        // Predicated region
        $region17: #{tpu_custom_call.1} parent=11 // pred_check
          %p378 = pneg %p250
        $region18: #{tpu_custom_call.1} parent=11 // pred_check_branch
          %380 = sbr.rel (%p378) target = $region20
        $region19: #{tpu_custom_call.1} parent=11 // pred_region
          _
        $region20: #{tpu_custom_call.1} parent=11 // pred_fallthru
          _
        // Predicated region
        $region21: #{tpu_custom_call.1} parent=11 // pred_check
          %p381 = pneg %p271
        $region22: #{tpu_custom_call.1} parent=11 // pred_check_branch
          %383 = sbr.rel (%p381) target = $region24
        $region23: #{tpu_custom_call.1} parent=11 // pred_region
          _
        $region24: #{tpu_custom_call.1} parent=11 // pred_fallthru
          _
        // Predicated region
        $region25: #{tpu_custom_call.1} parent=11 // pred_check
          %p384 = pneg %p292
        $region26: #{tpu_custom_call.1} parent=11 // pred_check_branch
          %386 = sbr.rel (%p384) target = $region28
        $region27: #{tpu_custom_call.1} parent=11 // pred_region
          _
        $region28: #{tpu_custom_call.1} parent=11 // pred_fallthru
          _
        // Predicated region
        $region29: #{tpu_custom_call.1} parent=11 // pred_check
          %p387 = pneg %p313
        $region30: #{tpu_custom_call.1} parent=11 // pred_check_branch
          %389 = sbr.rel (%p387) target = $region32
        $region31: #{tpu_custom_call.1} parent=11 // pred_region
          _
        $region32: #{tpu_custom_call.1} parent=11 // pred_fallthru
          _
        // Predicated region
        $region33: #{tpu_custom_call.1} parent=11 // pred_check
          %p390 = pneg %p334
        $region34: #{tpu_custom_call.1} parent=11 // pred_check_branch
          %392 = sbr.rel (%p390) target = $region36
        $region35: #{tpu_custom_call.1} parent=11 // pred_region
          _
        $region36: #{tpu_custom_call.1} parent=11 // pred_fallthru
          _
      $region12: #{tpu_custom_call.1} parent=5 // pred_fallthru
        _
      %p393 = scmp.lt.s32.totalorder %s26, 4
      // Predicated region
      $region37: #{tpu_custom_call.1} parent=5 // pred_check
        %p394 = pneg %p393
      $region38: #{tpu_custom_call.1} parent=5 // pred_check_branch
        %396 = sbr.rel (%p394) target = $region40
      $region39: #{tpu_custom_call.1} parent=5 // pred_region
        // Predicated region
        $region41: #{tpu_custom_call.1} parent=39 // pred_check
          %p397 = pneg %p66
        $region42: #{tpu_custom_call.1} parent=39 // pred_check_branch
          %399 = sbr.rel (%p397) target = $region44
        $region43: #{tpu_custom_call.1} parent=39 // pred_region
          #allocation13 [shape = 'u32[6]{0}', space=smem, size = 0x18, scoped, tag = 'DMA stride descriptor']
          %s400 = sand.u32 %s56, 1
          %s401 = scalar_lea.sflag [#allocation6], %s400
          %s402 = sand.u32 %s56, 1
          %s403 = smul.addr %s402, 64
          %s404 = scalar_lea.vmem [#allocation5], %s403
          %s405 = smul.u32 %s33, 2
          %s406 = sadd.s32 %s405, %s34
          %p407 = scmp.lt.s32.totalorder %s406, 2
          %s408 = scalar_select %p407, %s406, 2
          %s409 = smul.u32 4, %s408
          %s411 = ssub.s32 1024, 1024
          %412 = vsyncadd %s401, %s411
          %s413 = smul.addr %s409, 128
          %s414 = scalar_lea.hbm %s0, %s413
          %s416 = sshll.u32 1, 14
          %s417 = sxor.u32 4294967295, %s416
          %s419 = sld [smem:[#allocation0]]
          %s420 = sadd.s32 2, %s419
          %s422 = sshll.u32 7, 26
          %s423 = sxor.u32 4294967295, %s422
          %s424 = sand.u32 0, %s423
          %s425 = sshll.u32 %s420, 26
          %s426 = sor.u32 %s424, %s425
          %s427 = sshll.u32 %s404, 4
          %s428 = int_to_ptr.vmem [resolvable:$true] %s427
          %434 = sst [smem:[#allocation13]] 1536
          %s435 = scalar_lea.smem [#allocation13], 1
          %436 = sst [smem:[%s435]] 512
          %s437 = scalar_lea.smem [#allocation13], 2
          %438 = sst [smem:[%s437]] 4
          %s439 = scalar_lea.smem [#allocation13], 3
          %440 = sst [smem:[%s439]] 128
          %s441 = scalar_lea.smem [#allocation13], 4
          %442 = sst [smem:[%s441]] 128
          %s443 = scalar_lea.smem [#allocation13], 5
          %444 = sst [smem:[%s443]] 8
          %446 = dma.general %s414, 1024, %s428, %s401, 131072, [#allocation13], %s426, 0
        $region44: #{tpu_custom_call.1} parent=39 // pred_fallthru
          _
        // Predicated region
        $region45: #{tpu_custom_call.1} parent=39 // pred_check
          %p447 = pneg %p100
        $region46: #{tpu_custom_call.1} parent=39 // pred_check_branch
          %449 = sbr.rel (%p447) target = $region48
        $region47: #{tpu_custom_call.1} parent=39 // pred_region
          #allocation15 [shape = 'u32[6]{0}', space=smem, size = 0x18, scoped, tag = 'DMA stride descriptor']
          %s450 = sand.u32 %s26, 1
          %s451 = scalar_lea.sflag [#allocation9], %s450
          %s452 = sand.u32 %s90, 1
          %s453 = smul.addr %s452, 32
          %s454 = scalar_lea.vmem [#allocation8], %s453
          %s455 = smul.u32 %s33, 2
          %s456 = sadd.s32 %s455, %s34
          %p457 = scmp.lt.s32.totalorder %s456, 2
          %s458 = scalar_select %p457, %s456, 2
          %s459 = smul.u32 4, %s458
          %s461 = ssub.s32 512, 512
          %462 = vsyncadd %s451, %s461
          %s463 = smul.addr %s459, 64
          %s464 = scalar_lea.hbm %s1, %s463
          %s466 = sshll.u32 1, 14
          %s467 = sxor.u32 4294967295, %s466
          %s469 = sld [smem:[#allocation0]]
          %s470 = sadd.s32 2, %s469
          %s472 = sshll.u32 7, 26
          %s473 = sxor.u32 4294967295, %s472
          %s474 = sand.u32 0, %s473
          %s475 = sshll.u32 %s470, 26
          %s476 = sor.u32 %s474, %s475
          %s477 = sshll.u32 %s454, 4
          %s478 = int_to_ptr.vmem [resolvable:$true] %s477
          %484 = sst [smem:[#allocation15]] 768
          %s485 = scalar_lea.smem [#allocation15], 1
          %486 = sst [smem:[%s485]] 256
          %s487 = scalar_lea.smem [#allocation15], 2
          %488 = sst [smem:[%s487]] 4
          %s489 = scalar_lea.smem [#allocation15], 3
          %490 = sst [smem:[%s489]] 64
          %s491 = scalar_lea.smem [#allocation15], 4
          %492 = sst [smem:[%s491]] 64
          %s493 = scalar_lea.smem [#allocation15], 5
          %494 = sst [smem:[%s493]] 4
          %496 = dma.general %s464, 512, %s478, %s451, 131072, [#allocation15], %s476, 0
        $region48: #{tpu_custom_call.1} parent=39 // pred_fallthru
          _
        // Predicated region
        $region49: #{tpu_custom_call.1} parent=39 // pred_check
          %p497 = pneg %p134
        $region50: #{tpu_custom_call.1} parent=39 // pred_check_branch
          %499 = sbr.rel (%p497) target = $region52
        $region51: #{tpu_custom_call.1} parent=39 // pred_region
          #allocation17 [shape = 'u32[6]{0}', space=smem, size = 0x18, scoped, tag = 'DMA stride descriptor']
          %s500 = sand.u32 %s26, 1
          %s501 = scalar_lea.sflag [#allocation9], %s500
          %s502 = sand.u32 %s124, 1
          %s503 = smul.addr %s502, 32
          %s504 = scalar_lea.vmem [#allocation10], %s503
          %s505 = smul.u32 %s33, 2
          %s506 = sadd.s32 %s505, %s34
          %p507 = scmp.lt.s32.totalorder %s506, 2
          %s508 = scalar_select %p507, %s506, 2
          %s509 = smul.u32 4, %s508
          %s511 = ssub.s32 512, 512
          %512 = vsyncadd %s501, %s511
          %s513 = smul.addr %s509, 64
          %s514 = scalar_lea.hbm %s2, %s513
          %s516 = sshll.u32 1, 14
          %s517 = sxor.u32 4294967295, %s516
          %s519 = sld [smem:[#allocation0]]
          %s520 = sadd.s32 2, %s519
          %s522 = sshll.u32 7, 26
          %s523 = sxor.u32 4294967295, %s522
          %s524 = sand.u32 0, %s523
          %s525 = sshll.u32 %s520, 26
          %s526 = sor.u32 %s524, %s525
          %s527 = sshll.u32 %s504, 4
          %s528 = int_to_ptr.vmem [resolvable:$true] %s527
          %534 = sst [smem:[#allocation17]] 768
          %s535 = scalar_lea.smem [#allocation17], 1
          %536 = sst [smem:[%s535]] 256
          %s537 = scalar_lea.smem [#allocation17], 2
          %538 = sst [smem:[%s537]] 4
          %s539 = scalar_lea.smem [#allocation17], 3
          %540 = sst [smem:[%s539]] 64
          %s541 = scalar_lea.smem [#allocation17], 4
          %542 = sst [smem:[%s541]] 64
          %s543 = scalar_lea.smem [#allocation17], 5
          %544 = sst [smem:[%s543]] 4
          %546 = dma.general %s514, 512, %s528, %s501, 131072, [#allocation17], %s526, 0
        $region52: #{tpu_custom_call.1} parent=39 // pred_fallthru
          _
        // Predicated region
        $region53: #{tpu_custom_call.1} parent=39 // pred_check
          %p547 = pneg %p168
        $region54: #{tpu_custom_call.1} parent=39 // pred_check_branch
          %549 = sbr.rel (%p547) target = $region56
        $region55: #{tpu_custom_call.1} parent=39 // pred_region
          %s550 = smul.u32 %s33, 2
          %s551 = sadd.s32 %s550, %s34
          %p552 = scmp.lt.s32.totalorder %s551, 2
          %s553 = scalar_select %p552, %s551, 2
          %p554 = scmp.lt.s32.totalorder %s553, 2
          %s555 = scalar_select %p554, %s553, 2
          %s556 = smul.addr %s555, 2
          %s557 = scalar_lea.vmem %s3, %s556
          %s558 = smul.u32 %s33, 2
          %s559 = sadd.s32 %s558, %s34
          %p560 = scmp.lt.s32.totalorder %s559, 2
          %s561 = scalar_select %p560, %s559, 2
        $region56: #{tpu_custom_call.1} parent=39 // pred_fallthru
          _
        // Predicated region
        $region57: #{tpu_custom_call.1} parent=39 // pred_check
          %p562 = pneg %p202
        $region58: #{tpu_custom_call.1} parent=39 // pred_check_branch
          %564 = sbr.rel (%p562) target = $region60
        $region59: #{tpu_custom_call.1} parent=39 // pred_region
          %s565 = smul.u32 %s33, 2
          %s566 = sadd.s32 %s565, %s34
          %p567 = scmp.lt.s32.totalorder %s566, 2
          %s568 = scalar_select %p567, %s566, 2
          %p569 = scmp.lt.s32.totalorder %s568, 2
          %s570 = scalar_select %p569, %s568, 2
          %s571 = scalar_lea.vmem %s4, %s570
          %s572 = smul.u32 %s33, 2
          %s573 = sadd.s32 %s572, %s34
          %p574 = scmp.lt.s32.totalorder %s573, 2
          %s575 = scalar_select %p574, %s573, 2
        $region60: #{tpu_custom_call.1} parent=39 // pred_fallthru
          _
      $region40: #{tpu_custom_call.1} parent=5 // pred_fallthru
        _
      %p576 = scmp.le.s32.totalorder 1, %s26
      %p577 = scmp.lt.s32.totalorder %s26, 5
      %p578 = pnand %p576, %p577
      %p579 = pneg %p578
      // Predicated region
      $region61: #{tpu_custom_call.1} parent=5 // pred_check
        _
      $region62: #{tpu_custom_call.1} parent=5 // pred_check_branch
        %581 = sbr.rel (%p578) target = $region64
      $region63: #{tpu_custom_call.1} parent=5 // pred_region
        %s582 = ssub.s32 %s26, 1
        %s583 = sand.u32 %s59, 1
        %s584 = scalar_lea.sflag [#allocation6], %s583
        %s585 = sand.u32 %s59, 1
        %s586 = smul.addr %s585, 64
        %s587 = scalar_lea.vmem [#allocation5], %s586
        // Predicated region
        $region65: #{tpu_custom_call.1} parent=63 // pred_check
          %p588 = pneg %p72
        $region66: #{tpu_custom_call.1} parent=63 // pred_check_branch
          %590 = sbr.rel (%p588) target = $region68
        $region67: #{tpu_custom_call.1} parent=63 // pred_region
          %591 = dma.done %s584, 1024
        $region68: #{tpu_custom_call.1} parent=63 // pred_fallthru
          _
        %s592 = sand.u32 %s31, 1
        %s593 = scalar_lea.sflag [#allocation9], %s592
        %s594 = sand.u32 %s93, 1
        %s595 = smul.addr %s594, 32
        %s596 = scalar_lea.vmem [#allocation8], %s595
        // Predicated region
        $region69: #{tpu_custom_call.1} parent=63 // pred_check
          %p597 = pneg %p106
        $region70: #{tpu_custom_call.1} parent=63 // pred_check_branch
          %599 = sbr.rel (%p597) target = $region72
        $region71: #{tpu_custom_call.1} parent=63 // pred_region
          %600 = dma.done %s593, 512
        $region72: #{tpu_custom_call.1} parent=63 // pred_fallthru
          _
        %s601 = sand.u32 %s31, 1
        %s602 = scalar_lea.sflag [#allocation9], %s601
        %s603 = sand.u32 %s127, 1
        %s604 = smul.addr %s603, 32
        %s605 = scalar_lea.vmem [#allocation10], %s604
        // Predicated region
        $region73: #{tpu_custom_call.1} parent=63 // pred_check
          %p606 = pneg %p140
        $region74: #{tpu_custom_call.1} parent=63 // pred_check_branch
          %608 = sbr.rel (%p606) target = $region76
        $region75: #{tpu_custom_call.1} parent=63 // pred_region
          %609 = dma.done %s602, 512
        $region76: #{tpu_custom_call.1} parent=63 // pred_fallthru
          _
        %s610 = sand.u32 %s59, 1
        %s611 = scalar_lea.sflag [#allocation6], %s610
        %s612 = sand.u32 %s59, 1
        %s613 = smul.addr %s612, 64
        %s614 = scalar_lea.vmem [#allocation5], %s613
        %p615 = pneg %p72
        %p616 = pneg %p69
        %s617 = sand.u32 %s31, 1
        %s618 = scalar_lea.sflag [#allocation9], %s617
        %s619 = sand.u32 %s93, 1
        %s620 = smul.addr %s619, 32
        %s621 = scalar_lea.vmem [#allocation8], %s620
        %p622 = pneg %p106
        %p623 = pneg %p103
        %s624 = sand.u32 %s31, 1
        %s625 = scalar_lea.sflag [#allocation9], %s624
        %s626 = sand.u32 %s127, 1
        %s627 = smul.addr %s626, 32
        %s628 = scalar_lea.vmem [#allocation10], %s627
        %p629 = pneg %p140
        %p630 = pneg %p137
        %s631 = smul.u32 %s35, 2
        %s632 = sadd.s32 %s631, %s36
        %p633 = scmp.lt.s32.totalorder %s632, 2
        %s634 = scalar_select %p633, %s632, 2
        %p635 = scmp.lt.s32.totalorder %s634, 2
        %s636 = scalar_select %p635, %s634, 2
        %s637 = smul.addr %s636, 2
        %s638 = scalar_lea.vmem %s3, %s637
        %p639 = pneg %p174
        %p640 = pneg %p171
        %s641 = smul.u32 %s35, 2
        %s642 = sadd.s32 %s641, %s36
        %p643 = scmp.lt.s32.totalorder %s642, 2
        %s644 = scalar_select %p643, %s642, 2
        %p645 = scmp.lt.s32.totalorder %s644, 2
        %s646 = scalar_select %p645, %s644, 2
        %s647 = scalar_lea.vmem %s4, %s646
        %p648 = pneg %p208
        %p649 = pneg %p205
        %p650 = pneg %p229
        %p651 = pneg %p226
        %p652 = pneg %p250
        %p653 = pneg %p247
        %p654 = pneg %p271
        %p655 = pneg %p268
        %p656 = pneg %p292
        %p657 = pneg %p289
        %p658 = pneg %p313
        %p659 = pneg %p310
        %p660 = pneg %p334
        %p661 = pneg %p331
        %p662 = pneg %p360
        %p663 = pneg %p357
        %s664 = sand.u32 %s347, 1
        %s665 = scalar_lea.sflag [#allocation7], %s664
        %s666 = sand.u32 %s347, 1
        %s667 = smul.addr %s666, 8
        %s668 = scalar_lea.vmem [#allocation11], %s667
        %s669 = smul.u32 %s35, 2
        %s670 = sadd.s32 %s669, %s36
        %p671 = scmp.lt.s32.totalorder %s670, 2
        %s672 = scalar_select %p671, %s670, 2
        %s673 = smul.u32 4, %s672
        %s674 = smul.u32 %s35, 2
        %s675 = sadd.s32 %s674, %s36
        %p676 = scmp.lt.s32.totalorder %s675, 2
        %s677 = scalar_select %p676, %s675, 2
        %s678 = smul.u32 4, %s677
        %s679 = smul.u32 %s35, 2
        %s680 = sadd.s32 %s679, %s36
        %p681 = scmp.lt.s32.totalorder %s680, 2
        %s682 = scalar_select %p681, %s680, 2
        %s683 = smul.u32 4, %s682
        %s684 = smul.u32 %s35, 2
        %s685 = sadd.s32 %s684, %s36
        %p686 = scmp.lt.s32.totalorder %s685, 2
        %s687 = scalar_select %p686, %s685, 2
        %p688 = scmp.lt.s32.totalorder %s687, 2
        %s689 = scalar_select %p688, %s687, 2
        %s690 = smul.addr %s689, 2
        %s691 = scalar_lea.vmem %s3, %s690
        %s692 = smul.u32 %s35, 2
        %s693 = sadd.s32 %s692, %s36
        %p694 = scmp.lt.s32.totalorder %s693, 2
        %s695 = scalar_select %p694, %s693, 2
        %s696 = smul.u32 %s35, 2
        %s697 = sadd.s32 %s696, %s36
        %p698 = scmp.lt.s32.totalorder %s697, 2
        %s699 = scalar_select %p698, %s697, 2
        %p700 = scmp.lt.s32.totalorder %s699, 2
        %s701 = scalar_select %p700, %s699, 2
        %s702 = scalar_lea.vmem %s4, %s701
        %s703 = smul.u32 %s35, 2
        %s704 = sadd.s32 %s703, %s36
        %p705 = scmp.lt.s32.totalorder %s704, 2
        %s706 = scalar_select %p705, %s704, 2
        %v707 = vld [vmem:[%s10] sm:$0x3]
        %s708 = smul.u32 %s35, 2
        %s709 = sadd.s32 %s708, %s36
        %p710 = scmp.eq.s32.totalorder %s36, 0
        // Predicated region
        $region77: #{tpu_custom_call.1} parent=63 // pred_check
          %p711 = pneg %p710
        $region78: #{tpu_custom_call.1} parent=63 // pred_check_branch
          %713 = sbr.rel (%p711) target = $region80
        $region79: #{tpu_custom_call.1} parent=63 // pred_region
          %714 = vst [vmem:[#allocation2] sm:$0xff] 0.0
          %715 = vst [vmem:[#allocation2 + $0x8] sm:$0xff] 0.0
          %716 = vst [vmem:[#allocation2 + $0x10] sm:$0xff] 0.0
          %717 = vst [vmem:[#allocation2 + $0x18] sm:$0xff] 0.0
          %718 = vst [vmem:[#allocation3] sm:$0xff] 0.0
          %719 = vst [vmem:[#allocation3 + $0x8] sm:$0xff] 0.0
          %720 = vst [vmem:[#allocation3 + $0x10] sm:$0xff] 0.0
          %721 = vst [vmem:[#allocation3 + $0x18] sm:$0xff] 0.0
          %s722 = scalar_lea.smem [#allocation4], 0
          %723 = sst [smem:[%s722]] 0.0
          %s724 = scalar_lea.smem [#allocation4], 1
          %725 = sst [smem:[%s724]] 0.0
          %s726 = scalar_lea.smem [#allocation4], 2
          %727 = sst [smem:[%s726]] 0.0
          %s728 = scalar_lea.smem [#allocation4], 3
          %729 = sst [smem:[%s728]] 0.0
          %s730 = scalar_lea.smem [#allocation4], 4
          %731 = sst [smem:[%s730]] 0.0
        $region80: #{tpu_custom_call.1} parent=63 // pred_fallthru
          _
        %p732 = scmp.eq.s32.totalorder %s35, 0
        %p733 = pnand %p710, %p732
        %p734 = pneg %p733
        // Predicated region
        $region81: #{tpu_custom_call.1} parent=63 // pred_check
          _
        $region82: #{tpu_custom_call.1} parent=63 // pred_check_branch
          %736 = sbr.rel (%p733) target = $region84
        $region83: #{tpu_custom_call.1} parent=63 // pred_region
          %v737 = vld [vmem:[%s9] sm:$0x3]
          %v738 = vlaneseq
          %v739 = vand.u32 %v738, 127
          %740 = vset.pattern.permute.xlu0 0
          %741 = vperm.xlu0 %740, %v737
          %v742 = vpop.permute.xlu0 %741
          %vm743 = vcmp.lt.s32.totalorder %v739, %v742
          %v744 = vld [vmem:[%s6] sm:$0x1]
          %v745 = vunpack.c.l.bf16 %v744
          %v746 = vld [vmem:[%s5] sm:$0x3]
          %v747 = vsub.f32 %v745, %v746
          %v748 = vld [vmem:[%s8] sm:$0x1]
          %v749 = vunpack.c.l.bf16 %v748
          %v750 = vld [vmem:[%s7] sm:$0x3]
          %v751 = vcvt.s32.f32 %v750
          %v752 = vadd.f32 %v751, 1.0
          %v753 = vlog2.pop %v752
          %v754 = vmul.f32 %v753, 0.6931472
          %v755 = vsub.f32 %v749, %v754
          %v756 = vmul.f32 %v747, %v747
          %v757 = vsel %vm743, %v756, 0.0
          %vm758 = vcmask 58368
          %v759 = vsel %vm758, %v757, 0.0
          %760 = vadd.xlane.f32.xlu0 %v759
          %v761 = vpop.xlane.xlu0 %760
          %v762 = vrot.slane %v761, 4
          %v763 = vadd.f32 %v761, %v762
          %v764 = vrot.slane %v763, 2
          %v765 = vadd.f32 %v763, %v764
          %v766 = vrot.slane %v765, 1
          %v767 = vadd.f32 %v765, %v766
          %s768 = vtos %v767
          %s769 = scalar_lea.smem [#allocation4], 1
          %770 = sst [smem:[%s769]] %s768
          %v771 = vmul.f32 %v755, %v755
          %v772 = vsel %vm743, %v771, 0.0
          %v773 = vsel %vm758, %v772, 0.0
          %774 = vadd.xlane.f32.xlu0 %v773
          %v775 = vpop.xlane.xlu0 %774
          %v776 = vrot.slane %v775, 4
          %v777 = vadd.f32 %v775, %v776
          %v778 = vrot.slane %v777, 2
          %v779 = vadd.f32 %v777, %v778
          %v780 = vrot.slane %v779, 1
          %v781 = vadd.f32 %v779, %v780
          %s782 = vtos %v781
          %s783 = scalar_lea.smem [#allocation4], 2
          %784 = sst [smem:[%s783]] %s782
          %v785 = vcvt.s32.f32 %v707
          %vm786 = vcmask 1024
          %v787 = vsel %vm786, %v785, 0.0
          %788 = vadd.xlane.f32.xlu0 %v787
          %v789 = vpop.xlane.xlu0 %788
          %v790 = vrot.slane %v789, 4
          %v791 = vadd.f32 %v789, %v790
          %v792 = vrot.slane %v791, 2
          %v793 = vadd.f32 %v791, %v792
          %v794 = vrot.slane %v793, 1
          %v795 = vadd.f32 %v793, %v794
          %s796 = vtos %v795
          %s797 = scalar_lea.smem [#allocation4], 3
          %798 = sst [smem:[%s797]] %s796
          %v799 = vcvt.s32.f32 %v737
          %v800 = vsel %vm786, %v799, 0.0
          %801 = vadd.xlane.f32.xlu0 %v800
          %v802 = vpop.xlane.xlu0 %801
          %v803 = vrot.slane %v802, 4
          %v804 = vadd.f32 %v802, %v803
          %v805 = vrot.slane %v804, 2
          %v806 = vadd.f32 %v804, %v805
          %v807 = vrot.slane %v806, 1
          %v808 = vadd.f32 %v806, %v807
          %s809 = vtos %v808
          %s810 = scalar_lea.smem [#allocation4], 4
          %811 = sst [smem:[%s810]] %s809
        $region84: #{tpu_custom_call.1} parent=63 // pred_fallthru
          _
        %s812 = smul.u32 %s709, 128
        %v813 = vlaneseq
        %v814 = vand.u32 %v813, 127
        %v815 = vstv %s812
        %v816 = vadd.s32 %v815, %v814
        %817 = vset.pattern.permute.xlu0 0
        %818 = vperm.xlu0 %817, %v707
        %v819 = vpop.permute.xlu0 %818
        %vm820 = vcmp.lt.s32.totalorder %v816, %v819
        %v821 = vld [vmem:[%s702] sm:$0x1]
        %v822 = vunpack.c.l.bf16 %v821
        %v823 = vld [vmem:[%s691] sm:$0x3]
        %v824 = vsub.f32 %v822, %v823
        %s825 = sld [smem:[#allocation4]]
        %v826 = vmul.f32 %v824, %v824
        %v827 = vsel %vm820, %v826, 0.0
        %vm828 = vcmask 1041408
        %v829 = vsel %vm828, %v827, 0.0
        %830 = vadd.xlane.f32.xlu0 %v829
        %v831 = vpop.xlane.xlu0 %830
        %v832 = vrot.slane %v831, 4
        %v833 = vadd.f32 %v831, %v832
        %v834 = vrot.slane %v833, 2
        %v835 = vadd.f32 %v833, %v834
        %v836 = vrot.slane %v835, 1
        %v837 = vadd.f32 %v835, %v836
        %s838 = vtos %v837
        %s839 = sadd.f32 %s825, %s838
        %s840 = scalar_lea.smem [#allocation4], 0
        %841 = sst [smem:[%s840]] %s839
        %s842 = smul.u32 %s709, 32
        %v843 = vlaneseq
        %v844 = vshrl.u32 %v843, 7
        %v845 = vadd.s32 %v844, 8
        %v846 = vadd.s32 %v844, 16
        %v847 = vadd.s32 %v844, 24
        %v848 = vstv %s842
        %v849 = vadd.s32 %v848, %v844
        %v850 = vadd.s32 %v848, %v845
        %v851 = vadd.s32 %v848, %v846
        %v852 = vadd.s32 %v848, %v847
        %v853 = vmul.u32 %v849, 128
        %v854 = vmul.u32 %v850, 128
        %v855 = vmul.u32 %v851, 128
        %v856 = vmul.u32 %v852, 128
        %v857 = vadd.s32 %v853, %v814
        %v858 = vadd.s32 %v854, %v814
        %v859 = vadd.s32 %v855, %v814
        %v860 = vadd.s32 %v856, %v814
        %v862 = vunpack.c.l.s4 1966171168
        %v863 = vunpack.c.0.s8 %v862
        %v864 = vlaneseq
        %v865 = vshrl.u32 %v864, 7
        %v866 = vsub.s32 %v863, %v865
        %v867 = vrot.slane %v707, %v866
        %v868 = vcombine.high %v867, %v867
        %v870 = vunpack.c.l.s4 1966171168
        %v871 = vunpack.c.0.s8 %v870
        %v872 = vlaneseq
        %v873 = vshrl.u32 %v872, 7
        %v874 = vsub.s32 %v871, %v873
        %v875 = vrot.slane %v867, %v874
        %v877 = vunpack.c.l.s4 1966171168
        %v878 = vunpack.c.0.s8 %v877
        %v879 = vlaneseq
        %v880 = vshrl.u32 %v879, 7
        %v881 = vsub.s32 %v878, %v880
        %v882 = vrot.slane %v868, %v881
        %v883 = vmul.u32 %v875, 32
        %v884 = vmul.u32 %v882, 32
        %v885 = vlaneseq
        %v886 = vshrl.u32 %v885, 7
        %v887 = vsub.s32 0, %v886
        %v888 = vrot.slane %v883, %v887
        %v889 = vlaneseq
        %v890 = vshrl.u32 %v889, 7
        %v891 = vsub.s32 0, %v890
        %v892 = vrot.slane %v884, %v891
        %893 = vset.pattern.permute.xlu0 0
        %894 = vperm.xlu0 %893, %v888
        %v895 = vpop.permute.xlu0 %894
        %896 = vset.pattern.permute.xlu0 0
        %897 = vperm.xlu0 %896, %v892
        %v898 = vpop.permute.xlu0 %897
        %vm899 = vcmp.lt.s32.totalorder %v857, %v895
        %vm900 = vcmp.lt.s32.totalorder %v858, %v895
        %vm901 = vcmp.lt.s32.totalorder %v859, %v895
        %vm902 = vcmp.lt.s32.totalorder %v860, %v895
        %vm903 = vcmp.lt.s32.totalorder %v857, %v898
        %vm904 = vcmp.lt.s32.totalorder %v858, %v898
        %vm905 = vcmp.lt.s32.totalorder %v859, %v898
        %vm906 = vcmp.lt.s32.totalorder %v860, %v898
        %v907 = vld [vmem:[%s587] sm:$0xff]
        %v908 = vld [vmem:[%s587 + $0x8] sm:$0xff]
        %v909 = vld [vmem:[%s587 + $0x10] sm:$0xff]
        %v910 = vld [vmem:[%s587 + $0x18] sm:$0xff]
        %v911 = vld [vmem:[%s587 + $0x20] sm:$0xff]
        %v912 = vld [vmem:[%s587 + $0x28] sm:$0xff]
        %v913 = vld [vmem:[%s587 + $0x30] sm:$0xff]
        %v914 = vld [vmem:[%s587 + $0x38] sm:$0xff]
        %v915 = vld [vmem:[%s596] sm:$0xf]
        %v916 = vld [vmem:[%s596 + $0x4] sm:$0xf]
        %v917 = vld [vmem:[%s596 + $0x8] sm:$0xf]
        %v918 = vld [vmem:[%s596 + $0xc] sm:$0xf]
        %v919 = vld [vmem:[%s596 + $0x10] sm:$0xf]
        %v920 = vld [vmem:[%s596 + $0x14] sm:$0xf]
        %v921 = vld [vmem:[%s596 + $0x18] sm:$0xf]
        %v922 = vld [vmem:[%s596 + $0x1c] sm:$0xf]
        %v923 = vunpack.c.l.bf16 %v915
        %v924 = vunpack.c.l.bf16 %v916
        %v925 = vunpack.c.l.bf16 %v917
        %v926 = vunpack.c.l.bf16 %v918
        %v927 = vunpack.c.l.bf16 %v919
        %v928 = vunpack.c.l.bf16 %v920
        %v929 = vunpack.c.l.bf16 %v921
        %v930 = vunpack.c.l.bf16 %v922
        %v931 = vsub.f32 %v923, %v907
        %v932 = vsub.f32 %v924, %v908
        %v933 = vsub.f32 %v925, %v909
        %v934 = vsub.f32 %v926, %v910
        %v935 = vsub.f32 %v927, %v911
        %v936 = vsub.f32 %v928, %v912
        %v937 = vsub.f32 %v929, %v913
        %v938 = vsub.f32 %v930, %v914
        %v939 = vand.u32 2147483647, %v931
        %v940 = vand.u32 2147483647, %v932
        %v941 = vand.u32 2147483647, %v933
        %v942 = vand.u32 2147483647, %v934
        %v943 = vand.u32 2147483647, %v935
        %v944 = vand.u32 2147483647, %v936
        %v945 = vand.u32 2147483647, %v937
        %v946 = vand.u32 2147483647, %v938
        %v947 = vsel %vm899, %v939, 0.0
        %v948 = vsel %vm900, %v940, 0.0
        %v949 = vsel %vm901, %v941, 0.0
        %v950 = vsel %vm902, %v942, 0.0
        %v951 = vsel %vm903, %v943, 0.0
        %v952 = vsel %vm904, %v944, 0.0
        %v953 = vsel %vm905, %v945, 0.0
        %v954 = vsel %vm906, %v946, 0.0
        %v955 = vld [vmem:[%s605] sm:$0xf]
        %v956 = vld [vmem:[%s605 + $0x4] sm:$0xf]
        %v957 = vld [vmem:[%s605 + $0x8] sm:$0xf]
        %v958 = vld [vmem:[%s605 + $0xc] sm:$0xf]
        %v959 = vld [vmem:[%s605 + $0x10] sm:$0xf]
        %v960 = vld [vmem:[%s605 + $0x14] sm:$0xf]
        %v961 = vld [vmem:[%s605 + $0x18] sm:$0xf]
        %v962 = vld [vmem:[%s605 + $0x1c] sm:$0xf]
        %v963 = vunpack.c.l.bf16 %v955
        %v964 = vunpack.c.l.bf16 %v956
        %v965 = vunpack.c.l.bf16 %v957
        %v966 = vunpack.c.l.bf16 %v958
        %v967 = vunpack.c.l.bf16 %v959
        %v968 = vunpack.c.l.bf16 %v960
        %v969 = vunpack.c.l.bf16 %v961
        %v970 = vunpack.c.l.bf16 %v962
        %v971 = vsub.f32 %v963, %v907
        %v972 = vsub.f32 %v964, %v908
        %v973 = vsub.f32 %v965, %v909
        %v974 = vsub.f32 %v966, %v910
        %v975 = vsub.f32 %v967, %v911
        %v976 = vsub.f32 %v968, %v912
        %v977 = vsub.f32 %v969, %v913
        %v978 = vsub.f32 %v970, %v914
        %v979 = vand.u32 2147483647, %v971
        %v980 = vand.u32 2147483647, %v972
        %v981 = vand.u32 2147483647, %v973
        %v982 = vand.u32 2147483647, %v974
        %v983 = vand.u32 2147483647, %v975
        %v984 = vand.u32 2147483647, %v976
        %v985 = vand.u32 2147483647, %v977
        %v986 = vand.u32 2147483647, %v978
        %v987 = vsel %vm899, %v979, 0.0
        %v988 = vsel %vm900, %v980, 0.0
        %v989 = vsel %vm901, %v981, 0.0
        %v990 = vsel %vm902, %v982, 0.0
        %v991 = vsel %vm903, %v983, 0.0
        %v992 = vsel %vm904, %v984, 0.0
        %v993 = vsel %vm905, %v985, 0.0
        %v994 = vsel %vm906, %v986, 0.0
        %v995 = vld [vmem:[#allocation2] sm:$0xff]
        %v996 = vld [vmem:[#allocation2 + $0x8] sm:$0xff]
        %v997 = vld [vmem:[#allocation2 + $0x10] sm:$0xff]
        %v998 = vld [vmem:[#allocation2 + $0x18] sm:$0xff]
        %v999 = vadd.f32 %v947, %v951
        %v1000 = vadd.f32 %v948, %v952
        %v1001 = vadd.f32 %v949, %v953
        %v1002 = vadd.f32 %v950, %v954
        %v1003 = vadd.f32 %v995, %v999
        %v1004 = vadd.f32 %v996, %v1000
        %v1005 = vadd.f32 %v997, %v1001
        %v1006 = vadd.f32 %v998, %v1002
        %1007 = vst [vmem:[#allocation2] sm:$0xff] %v1003
        %1008 = vst [vmem:[#allocation2 + $0x8] sm:$0xff] %v1004
        %1009 = vst [vmem:[#allocation2 + $0x10] sm:$0xff] %v1005
        %1010 = vst [vmem:[#allocation2 + $0x18] sm:$0xff] %v1006
        %v1011 = vld [vmem:[#allocation3] sm:$0xff]
        %v1012 = vld [vmem:[#allocation3 + $0x8] sm:$0xff]
        %v1013 = vld [vmem:[#allocation3 + $0x10] sm:$0xff]
        %v1014 = vld [vmem:[#allocation3 + $0x18] sm:$0xff]
        %v1015 = vadd.f32 %v987, %v991
        %v1016 = vadd.f32 %v988, %v992
        %v1017 = vadd.f32 %v989, %v993
        %v1018 = vadd.f32 %v990, %v994
        %v1019 = vadd.f32 %v1011, %v1015
        %v1020 = vadd.f32 %v1012, %v1016
        %v1021 = vadd.f32 %v1013, %v1017
        %v1022 = vadd.f32 %v1014, %v1018
        %1023 = vst [vmem:[#allocation3] sm:$0xff] %v1019
        %1024 = vst [vmem:[#allocation3 + $0x8] sm:$0xff] %v1020
        %1025 = vst [vmem:[#allocation3 + $0x10] sm:$0xff] %v1021
        %1026 = vst [vmem:[#allocation3 + $0x18] sm:$0xff] %v1022
        %p1027 = scmp.eq.s32.totalorder %s36, 1
        // Predicated region
        $region85: #{tpu_custom_call.1} parent=63 // pred_check
          %p1028 = pneg %p1027
        $region86: #{tpu_custom_call.1} parent=63 // pred_check_branch
          %1030 = sbr.rel (%p1028) target = $region88
        $region87: #{tpu_custom_call.1} parent=63 // pred_region
          %v1031 = vld [vmem:[#allocation2] sm:$0xff]
          %v1032 = vld [vmem:[#allocation2 + $0x8] sm:$0xff]
          %v1033 = vld [vmem:[#allocation2 + $0x10] sm:$0xff]
          %v1034 = vld [vmem:[#allocation2 + $0x18] sm:$0xff]
          %v1035 = vadd.f32 %v1031, %v1032
          %v1036 = vadd.f32 %v1035, %v1033
          %v1037 = vadd.f32 %v1036, %v1034
          %1038 = vadd.xlane.f32.xlu0 %v1037
          %v1039 = vpop.xlane.xlu0 %1038
          %v1040 = vrot.slane %v1039, 4
          %v1041 = vadd.f32 %v1039, %v1040
          %v1042 = vrot.slane %v1041, 2
          %v1043 = vadd.f32 %v1041, %v1042
          %v1044 = vrot.slane %v1043, 1
          %v1045 = vadd.f32 %v1043, %v1044
          %s1046 = vtos %v1045
          %v1047 = vld [vmem:[#allocation3] sm:$0xff]
          %v1048 = vld [vmem:[#allocation3 + $0x8] sm:$0xff]
          %v1049 = vld [vmem:[#allocation3 + $0x10] sm:$0xff]
          %v1050 = vld [vmem:[#allocation3 + $0x18] sm:$0xff]
          %v1051 = vadd.f32 %v1047, %v1048
          %v1052 = vadd.f32 %v1051, %v1049
          %v1053 = vadd.f32 %v1052, %v1050
          %1054 = vadd.xlane.f32.xlu0 %v1053
          %v1055 = vpop.xlane.xlu0 %1054
          %v1056 = vrot.slane %v1055, 4
          %v1057 = vadd.f32 %v1055, %v1056
          %v1058 = vrot.slane %v1057, 2
          %v1059 = vadd.f32 %v1057, %v1058
          %v1060 = vrot.slane %v1059, 1
          %v1061 = vadd.f32 %v1059, %v1060
          %s1062 = vtos %v1061
          %s1063 = sld [smem:[#allocation4]]
          %s1064 = sld [smem:[#allocation4 + $0x1]]
          %s1065 = sld [smem:[#allocation4 + $0x2]]
          %s1066 = sld [smem:[#allocation4 + $0x3]]
          %s1067 = sld [smem:[#allocation4 + $0x4]]
          %vm1068 = vcmp.eq.s32.totalorder %v844, 0
          %v1069 = vstv %s1046
          %v1070 = vsel %vm1068, %v1069, 0.0
          %vm1071 = vcmp.eq.s32.totalorder %v844, 1
          %v1072 = vstv %s1062
          %v1073 = vsel %vm1071, %v1072, %v1070
          %vm1074 = vcmp.eq.s32.totalorder %v844, 2
          %v1075 = vstv %s1063
          %v1076 = vsel %vm1074, %v1075, %v1073
          %vm1077 = vcmp.eq.s32.totalorder %v844, 3
          %v1078 = vstv %s1064
          %v1079 = vsel %vm1077, %v1078, %v1076
          %vm1080 = vcmp.eq.s32.totalorder %v844, 4
          %v1081 = vstv %s1065
          %v1082 = vsel %vm1080, %v1081, %v1079
          %vm1083 = vcmp.eq.s32.totalorder %v844, 5
          %v1084 = vstv %s1066
          %v1085 = vsel %vm1083, %v1084, %v1082
          %vm1086 = vcmp.eq.s32.totalorder %v844, 6
          %v1087 = vstv %s1067
          %v1088 = vsel %vm1086, %v1087, %v1085
          %1089 = vst [vmem:[%s668] sm:$0xff] %v1088
        $region88: #{tpu_custom_call.1} parent=63 // pred_fallthru
          _
        %s1090 = sand.u32 %s347, 1
        %s1091 = scalar_lea.sflag [#allocation7], %s1090
        %s1092 = sand.u32 %s347, 1
        %s1093 = smul.addr %s1092, 8
        %s1094 = scalar_lea.vmem [#allocation11], %s1093
        // Predicated region
        $region89: #{tpu_custom_call.1} parent=63 // pred_check
          %p1095 = pneg %p357
        $region90: #{tpu_custom_call.1} parent=63 // pred_check_branch
          %1097 = sbr.rel (%p1095) target = $region92
        $region91: #{tpu_custom_call.1} parent=63 // pred_region
          %s1099 = ssub.s32 128, 128
          %1100 = vsyncadd %s1091, %s1099
          %s1101 = smul.addr %s35, 128
          %s1102 = scalar_lea.hbm %s11, %s1101
          %s1104 = sshll.u32 %s1094, 4
          %s1105 = int_to_ptr.vmem [resolvable:$true] %s1104
          %1107 = dma.vmem_to_hbm [thread:$0]  %s1105, 128, %s1102, %s1091
        $region92: #{tpu_custom_call.1} parent=63 // pred_fallthru
          _
      $region64: #{tpu_custom_call.1} parent=5 // pred_fallthru
        _
      %p1108 = scmp.le.s32.totalorder 2, %s26
      // Predicated region
      $region93: #{tpu_custom_call.1} parent=5 // pred_check
        %p1109 = pneg %p1108
      $region94: #{tpu_custom_call.1} parent=5 // pred_check_branch
        %1111 = sbr.rel (%p1109) target = $region96
      $region95: #{tpu_custom_call.1} parent=5 // pred_region
        %s1112 = ssub.s32 %s26, 2
        // Predicated region
        $region97: #{tpu_custom_call.1} parent=95 // pred_check
          %p1113 = pneg %p363
        $region98: #{tpu_custom_call.1} parent=95 // pred_check_branch
          %1115 = sbr.rel (%p1113) target = $region100
        $region99: #{tpu_custom_call.1} parent=95 // pred_region
          %s1116 = sand.u32 %s348, 1
          %s1117 = scalar_lea.sflag [#allocation7], %s1116
          %s1118 = sand.u32 %s348, 1
          %s1119 = smul.addr %s1118, 8
          %s1120 = scalar_lea.vmem [#allocation11], %s1119
          %1121 = dma.done %s1117, 128
        $region100: #{tpu_custom_call.1} parent=95 // pred_fallthru
          _
      $region96: #{tpu_custom_call.1} parent=5 // pred_fallthru
        _
    $region6: #{tpu_custom_call.1} parent=1 // loop_footer
      %s30 = sadd.s32 1, %s26
    $region7: #{tpu_custom_call.1} parent=1 // loop_footer_branch
      %25 = sbr.rel target = $region3
    $region8: #{tpu_custom_call.1} parent=1 // loop_exit
      _
    %1122 = vsyncpa [#allocation6], 1
    %s1123 = scalar_lea.sflag [#allocation6], 1
    %1124 = vsyncpa %s1123, 1
    %1125 = vsyncpa [#allocation9], 1
    %s1126 = scalar_lea.sflag [#allocation9], 1
    %1127 = vsyncpa %s1126, 1
    %1128 = vsyncpa [#allocation7], 1
    %s1129 = scalar_lea.sflag [#allocation7], 1
    %1130 = vsyncpa %s1129, 1

</llo_original>
